<compile_context>
chip_gen: v5e
topology: v5e:2x2
jax: 0.10.0
libtpu: 0.0.40
codegen_flags: <defaults>
</compile_context>

<pallas_src>
import jax
import jax.numpy as jnp
from jax.experimental import pallas as pl
from jax.experimental.pallas import tpu as pltpu

HIDDEN = 256
LANE = 128


def _round_up(x, m):
    return (x + m - 1) // m * m


def dqn_kernel(x_ref, w1_ref, wmid_ref, wlast_ref, bhid_ref, blast_ref, out_ref):
    """Full 7-layer residual-MLP forward on one VMEM-resident batch tile.

    x_ref:     [TB, IN]         f32
    w1_ref:    [IN, 256]        bf16
    wmid_ref:  [5, 256, 256]    bf16  (fc2..fc6 stacked)
    wlast_ref: [256, OUT_PAD]   bf16  (zero-padded to a lane-dense width)
    bhid_ref:  [6, 256]         f32   (fc1..fc6 biases stacked)
    blast_ref: [1, OUT_PAD]     f32
    out_ref:   [TB, OUT_PAD]    f32
    """
    def mm(h, w):
        # bf16 operands into the MXU, f32 accumulation out.
        return jnp.dot(h.astype(jnp.bfloat16), w, preferred_element_type=jnp.float32)

    bh = bhid_ref[...]                                    # [6, 256] f32, loaded once

    # fc1 + ReLU
    h = jnp.maximum(mm(x_ref[...], w1_ref[...]) + bh[0:1, :], 0.0)

    # fc2..fc6: h = relu(fc(h) + b) + h   (ReLU / residual kept in f32)
    for k in range(5):
        hk = mm(h, wmid_ref[k]) + bh[k + 1:k + 2, :]
        h = jnp.maximum(hk, 0.0) + h

    # last_fc (no activation); lane-dense (128-wide) unmasked store.
    out_ref[...] = (mm(h, wlast_ref[...]) + blast_ref[...]).astype(out_ref.dtype)


def dqn_forward(x, params, *, tile_b=128):
    """x: [B, input_size] f32; params: list of 7 tuples (W[in,out] f32, b[1,out] f32)."""
    B, in_size = x.shape
    out_size = params[-1][0].shape[1]
    out_pad = _round_up(max(out_size, LANE), LANE)

    # --- pack parameters into a few large transfers --------------------------
    w1 = params[0][0].astype(jnp.bfloat16)                                      # [IN,256]
    wmid = jnp.stack([params[i][0] for i in range(1, 6)]).astype(jnp.bfloat16)  # [5,256,256]
    wlast = jnp.pad(params[6][0],
                    ((0, 0), (0, out_pad - out_size))).astype(jnp.bfloat16)     # [256,OUT_PAD]
    bhid = jnp.concatenate([params[i][1] for i in range(6)], axis=0)            # [6,256] f32
    blast = jnp.pad(params[6][1], ((0, 0), (0, out_pad - out_size)))            # [1,OUT_PAD] f32

    # --- batch tiling (sublane-aligned) ---------------------------------------
    tile_b = min(tile_b, _round_up(B, 8))          # tile is a multiple of 8 sublanes
    padded_b = _round_up(B, tile_b)
    if padded_b != B:
        x = jnp.pad(x, ((0, padded_b - B), (0, 0)))
    grid = (padded_b // tile_b,)

    out = pl.pallas_call(
        dqn_kernel,
        out_shape=jax.ShapeDtypeStruct((padded_b, out_pad), jnp.float32),
        grid=grid,
        in_specs=[
            pl.BlockSpec((tile_b, in_size), lambda i: (i, 0)),       # x: streamed per tile
            pl.BlockSpec((in_size, HIDDEN), lambda i: (0, 0)),       # weights: constant index
            pl.BlockSpec((5, HIDDEN, HIDDEN), lambda i: (0, 0, 0)),  #  -> stay VMEM-resident
            pl.BlockSpec((HIDDEN, out_pad), lambda i: (0, 0)),
            pl.BlockSpec((6, HIDDEN), lambda i: (0, 0)),
            pl.BlockSpec((1, out_pad), lambda i: (0, 0)),
        ],
        out_specs=pl.BlockSpec((tile_b, out_pad), lambda i: (i, 0)),
        compiler_params=pltpu.CompilerParams(
            dimension_semantics=("parallel",),       # batch tiles shard across TCs on v7x
            vmem_limit_bytes=32 * 1024 * 1024,
        ),
    )(x, w1, wmid, wlast, bhid, blast)

    return out[:B, :out_size]


def init_params(key, input_size, output_size):
    """Deterministic init mimicking PyTorch nn.Linear default (U[-1/sqrt(fan_in), +])."""
    sizes = [(input_size, HIDDEN)] + [(HIDDEN, HIDDEN)] * 5 + [(HIDDEN, output_size)]
    params = []
    for fan_in, fan_out in sizes:
        key, kw, kb = jax.random.split(key, 3)
        bound = 1.0 / (fan_in ** 0.5)
        w = jax.random.uniform(kw, (fan_in, fan_out), jnp.float32, -bound, bound)
        b = jax.random.uniform(kb, (1, fan_out), jnp.float32, -bound, bound)
        params.append((w, b))
    return params


def dqn_reference(x, params):
    """Pure-JAX reference with the same bf16-weight / f32-accumulate numerics."""
    def mm(h, w):
        return jnp.dot(h.astype(jnp.bfloat16), w.astype(jnp.bfloat16),
                       preferred_element_type=jnp.float32)

    w, b = params[0]
    h = jnp.maximum(mm(x, w) + b, 0.0)
    for w, b in params[1:6]:
        h = jnp.maximum(mm(h, w) + b, 0.0) + h
    w, b = params[6]
    return mm(h, w) + b


if __name__ == "__main__":
    key = jax.random.PRNGKey(0)
    input_size, output_size, batch = 64, 8, 40

    kx, kp = jax.random.split(key)
    x = jax.random.normal(kx, (batch, input_size), jnp.float32)
    params = init_params(kp, input_size, output_size)

    # tile_b=16 -> batch padded to 48, 3 grid steps: exercises tiling + padding path.
    out = dqn_forward(x, params, tile_b=16)
    jax.block_until_ready(out)

    ref = dqn_reference(x, params)
    assert out.shape == (batch, output_size)
    assert jnp.allclose(out, ref, atol=5e-3, rtol=5e-3), float(jnp.max(jnp.abs(out - ref)))

    print("KERNEL_OK")
</pallas_src>

<mosaic_0001>
module attributes {stable_mosaic.version = 11 : i64} {
  func.func @dqn_kernel(%arg0: i32, %arg1: memref<16x64xf32, #tpu.memory_space<vmem>>, %arg2: memref<64x256xbf16, #tpu.memory_space<vmem>>, %arg3: memref<5x256x256xbf16, #tpu.memory_space<vmem>>, %arg4: memref<256x128xbf16, #tpu.memory_space<vmem>>, %arg5: memref<6x256xf32, #tpu.memory_space<vmem>>, %arg6: memref<1x128xf32, #tpu.memory_space<vmem>>, %arg7: memref<16x128xf32, #tpu.memory_space<vmem>>) attributes {dimension_semantics = [#tpu.dimension_semantics<parallel>], iteration_bounds = array<i64: 3>, scalar_prefetch = 0 : i64, scratch_operands = 0 : i64, tpu.core_type = #tpu.core_type<tc>, window_params = [{transform_indices = @transform_0, window_bounds = array<i64: 16, 64>}, {pipeline_mode = #tpu.pipeline_mode<synchronous>, transform_indices = @transform_1, window_bounds = array<i64: 64, 256>}, {pipeline_mode = #tpu.pipeline_mode<synchronous>, transform_indices = @transform_2, window_bounds = array<i64: 5, 256, 256>}, {pipeline_mode = #tpu.pipeline_mode<synchronous>, transform_indices = @transform_3, window_bounds = array<i64: 256, 128>}, {pipeline_mode = #tpu.pipeline_mode<synchronous>, transform_indices = @transform_4, window_bounds = array<i64: 6, 256>}, {pipeline_mode = #tpu.pipeline_mode<synchronous>, transform_indices = @transform_5, window_bounds = array<i64: 1, 128>}, {transform_indices = @transform_6, window_bounds = array<i64: 16, 128>}]} {
    %c0 = arith.constant 0 : index
    %c0_0 = arith.constant 0 : index
    %0 = vector.load %arg5[%c0, %c0_0] : memref<6x256xf32, #tpu.memory_space<vmem>>, vector<6x256xf32>
    %c0_1 = arith.constant 0 : index
    %c0_2 = arith.constant 0 : index
    %1 = vector.load %arg1[%c0_1, %c0_2] : memref<16x64xf32, #tpu.memory_space<vmem>>, vector<16x64xf32>
    %c0_3 = arith.constant 0 : index
    %c0_4 = arith.constant 0 : index
    %2 = vector.load %arg2[%c0_3, %c0_4] : memref<64x256xbf16, #tpu.memory_space<vmem>>, vector<64x256xbf16>
    %3 = arith.truncf %1 : vector<16x64xf32> to vector<16x64xbf16>
    %cst = arith.constant dense<0.000000e+00> : vector<16x256xf32>
    %4 = tpu.matmul %3, %2, %cst {dimension_numbers = #tpu.dot_dimension_numbers<[1], [0], [0], [1], [0, 0, 1, 1], [], []>} : vector<16x64xbf16>, vector<64x256xbf16>, vector<16x256xf32> -> vector<16x256xf32>
    %5 = vector.extract_strided_slice %0 {offsets = [0, 0], sizes = [1, 256], strides = [1, 1]} : vector<6x256xf32> to vector<1x256xf32>
    %6 = vector.broadcast %5 : vector<1x256xf32> to vector<16x256xf32>
    %7 = arith.addf %4, %6 : vector<16x256xf32>
    %cst_5 = arith.constant 0.000000e+00 : f32
    %8 = vector.broadcast %cst_5 : f32 to vector<16x256xf32>
    %9 = arith.maximumf %7, %8 : vector<16x256xf32>
    %c0_6 = arith.constant 0 : index
    %c0_7 = arith.constant 0 : index
    %c0_8 = arith.constant 0 : index
    %10 = vector.load %arg3[%c0_6, %c0_7, %c0_8] : memref<5x256x256xbf16, #tpu.memory_space<vmem>>, vector<1x256x256xbf16>
    %11 = vector.shape_cast %10 : vector<1x256x256xbf16> to vector<256x256xbf16>
    %12 = arith.truncf %9 : vector<16x256xf32> to vector<16x256xbf16>
    %cst_9 = arith.constant dense<0.000000e+00> : vector<16x256xf32>
    %13 = tpu.matmul %12, %11, %cst_9 {dimension_numbers = #tpu.dot_dimension_numbers<[1], [0], [0], [1], [0, 0, 1, 1], [], []>} : vector<16x256xbf16>, vector<256x256xbf16>, vector<16x256xf32> -> vector<16x256xf32>
    %14 = vector.extract_strided_slice %0 {offsets = [1, 0], sizes = [1, 256], strides = [1, 1]} : vector<6x256xf32> to vector<1x256xf32>
    %15 = vector.broadcast %14 : vector<1x256xf32> to vector<16x256xf32>
    %16 = arith.addf %13, %15 : vector<16x256xf32>
    %cst_10 = arith.constant 0.000000e+00 : f32
    %17 = vector.broadcast %cst_10 : f32 to vector<16x256xf32>
    %18 = arith.maximumf %16, %17 : vector<16x256xf32>
    %19 = arith.addf %18, %9 : vector<16x256xf32>
    %c1 = arith.constant 1 : index
    %c0_11 = arith.constant 0 : index
    %c0_12 = arith.constant 0 : index
    %20 = vector.load %arg3[%c1, %c0_11, %c0_12] : memref<5x256x256xbf16, #tpu.memory_space<vmem>>, vector<1x256x256xbf16>
    %21 = vector.shape_cast %20 : vector<1x256x256xbf16> to vector<256x256xbf16>
    %22 = arith.truncf %19 : vector<16x256xf32> to vector<16x256xbf16>
    %cst_13 = arith.constant dense<0.000000e+00> : vector<16x256xf32>
    %23 = tpu.matmul %22, %21, %cst_13 {dimension_numbers = #tpu.dot_dimension_numbers<[1], [0], [0], [1], [0, 0, 1, 1], [], []>} : vector<16x256xbf16>, vector<256x256xbf16>, vector<16x256xf32> -> vector<16x256xf32>
    %24 = vector.extract_strided_slice %0 {offsets = [2, 0], sizes = [1, 256], strides = [1, 1]} : vector<6x256xf32> to vector<1x256xf32>
    %25 = vector.broadcast %24 : vector<1x256xf32> to vector<16x256xf32>
    %26 = arith.addf %23, %25 : vector<16x256xf32>
    %cst_14 = arith.constant 0.000000e+00 : f32
    %27 = vector.broadcast %cst_14 : f32 to vector<16x256xf32>
    %28 = arith.maximumf %26, %27 : vector<16x256xf32>
    %29 = arith.addf %28, %19 : vector<16x256xf32>
    %c2 = arith.constant 2 : index
    %c0_15 = arith.constant 0 : index
    %c0_16 = arith.constant 0 : index
    %30 = vector.load %arg3[%c2, %c0_15, %c0_16] : memref<5x256x256xbf16, #tpu.memory_space<vmem>>, vector<1x256x256xbf16>
    %31 = vector.shape_cast %30 : vector<1x256x256xbf16> to vector<256x256xbf16>
    %32 = arith.truncf %29 : vector<16x256xf32> to vector<16x256xbf16>
    %cst_17 = arith.constant dense<0.000000e+00> : vector<16x256xf32>
    %33 = tpu.matmul %32, %31, %cst_17 {dimension_numbers = #tpu.dot_dimension_numbers<[1], [0], [0], [1], [0, 0, 1, 1], [], []>} : vector<16x256xbf16>, vector<256x256xbf16>, vector<16x256xf32> -> vector<16x256xf32>
    %34 = vector.extract_strided_slice %0 {offsets = [3, 0], sizes = [1, 256], strides = [1, 1]} : vector<6x256xf32> to vector<1x256xf32>
    %35 = vector.broadcast %34 : vector<1x256xf32> to vector<16x256xf32>
    %36 = arith.addf %33, %35 : vector<16x256xf32>
    %cst_18 = arith.constant 0.000000e+00 : f32
    %37 = vector.broadcast %cst_18 : f32 to vector<16x256xf32>
    %38 = arith.maximumf %36, %37 : vector<16x256xf32>
    %39 = arith.addf %38, %29 : vector<16x256xf32>
    %c3 = arith.constant 3 : index
    %c0_19 = arith.constant 0 : index
    %c0_20 = arith.constant 0 : index
    %40 = vector.load %arg3[%c3, %c0_19, %c0_20] : memref<5x256x256xbf16, #tpu.memory_space<vmem>>, vector<1x256x256xbf16>
    %41 = vector.shape_cast %40 : vector<1x256x256xbf16> to vector<256x256xbf16>
    %42 = arith.truncf %39 : vector<16x256xf32> to vector<16x256xbf16>
    %cst_21 = arith.constant dense<0.000000e+00> : vector<16x256xf32>
    %43 = tpu.matmul %42, %41, %cst_21 {dimension_numbers = #tpu.dot_dimension_numbers<[1], [0], [0], [1], [0, 0, 1, 1], [], []>} : vector<16x256xbf16>, vector<256x256xbf16>, vector<16x256xf32> -> vector<16x256xf32>
    %44 = vector.extract_strided_slice %0 {offsets = [4, 0], sizes = [1, 256], strides = [1, 1]} : vector<6x256xf32> to vector<1x256xf32>
    %45 = vector.broadcast %44 : vector<1x256xf32> to vector<16x256xf32>
    %46 = arith.addf %43, %45 : vector<16x256xf32>
    %cst_22 = arith.constant 0.000000e+00 : f32
    %47 = vector.broadcast %cst_22 : f32 to vector<16x256xf32>
    %48 = arith.maximumf %46, %47 : vector<16x256xf32>
    %49 = arith.addf %48, %39 : vector<16x256xf32>
    %c4 = arith.constant 4 : index
    %c0_23 = arith.constant 0 : index
    %c0_24 = arith.constant 0 : index
    %50 = vector.load %arg3[%c4, %c0_23, %c0_24] : memref<5x256x256xbf16, #tpu.memory_space<vmem>>, vector<1x256x256xbf16>
    %51 = vector.shape_cast %50 : vector<1x256x256xbf16> to vector<256x256xbf16>
    %52 = arith.truncf %49 : vector<16x256xf32> to vector<16x256xbf16>
    %cst_25 = arith.constant dense<0.000000e+00> : vector<16x256xf32>
    %53 = tpu.matmul %52, %51, %cst_25 {dimension_numbers = #tpu.dot_dimension_numbers<[1], [0], [0], [1], [0, 0, 1, 1], [], []>} : vector<16x256xbf16>, vector<256x256xbf16>, vector<16x256xf32> -> vector<16x256xf32>
    %54 = vector.extract_strided_slice %0 {offsets = [5, 0], sizes = [1, 256], strides = [1, 1]} : vector<6x256xf32> to vector<1x256xf32>
    %55 = vector.broadcast %54 : vector<1x256xf32> to vector<16x256xf32>
    %56 = arith.addf %53, %55 : vector<16x256xf32>
    %cst_26 = arith.constant 0.000000e+00 : f32
    %57 = vector.broadcast %cst_26 : f32 to vector<16x256xf32>
    %58 = arith.maximumf %56, %57 : vector<16x256xf32>
    %59 = arith.addf %58, %49 : vector<16x256xf32>
    %c0_27 = arith.constant 0 : index
    %c0_28 = arith.constant 0 : index
    %60 = vector.load %arg4[%c0_27, %c0_28] : memref<256x128xbf16, #tpu.memory_space<vmem>>, vector<256x128xbf16>
    %61 = arith.truncf %59 : vector<16x256xf32> to vector<16x256xbf16>
    %cst_29 = arith.constant dense<0.000000e+00> : vector<16x128xf32>
    %62 = tpu.matmul %61, %60, %cst_29 {dimension_numbers = #tpu.dot_dimension_numbers<[1], [0], [0], [1], [0, 0, 1, 1], [], []>} : vector<16x256xbf16>, vector<256x128xbf16>, vector<16x128xf32> -> vector<16x128xf32>
    %c0_30 = arith.constant 0 : index
    %c0_31 = arith.constant 0 : index
    %63 = vector.load %arg6[%c0_30, %c0_31] : memref<1x128xf32, #tpu.memory_space<vmem>>, vector<1x128xf32>
    %64 = vector.broadcast %63 : vector<1x128xf32> to vector<16x128xf32>
    %65 = arith.addf %62, %64 : vector<16x128xf32>
    %c0_32 = arith.constant 0 : index
    %c0_33 = arith.constant 0 : index
    %66 = vector.load %arg7[%c0_32, %c0_33] : memref<16x128xf32, #tpu.memory_space<vmem>>, vector<16x128xf32>
    tpu.vector_store %arg7[%c0_32, %c0_33], %65 {strides = array<i32>} : memref<16x128xf32, #tpu.memory_space<vmem>>, vector<16x128xf32>,
    return
  }
  func.func @transform_0(%arg0: i32) -> (i32, i32) {
    %c0_i32 = arith.constant 0 : i32
    %c0_i32_0 = arith.constant 0 : i32
    return %arg0, %c0_i32 : i32, i32
  }
  func.func @transform_1(%arg0: i32) -> (i32, i32) {
    %c0_i32 = arith.constant 0 : i32
    %c0_i32_0 = arith.constant 0 : i32
    %c0_i32_1 = arith.constant 0 : i32
    return %c0_i32, %c0_i32_0 : i32, i32
  }
  func.func @transform_2(%arg0: i32) -> (i32, i32, i32) {
    %c0_i32 = arith.constant 0 : i32
    %c0_i32_0 = arith.constant 0 : i32
    %c0_i32_1 = arith.constant 0 : i32
    %c0_i32_2 = arith.constant 0 : i32
    return %c0_i32, %c0_i32_0, %c0_i32_1 : i32, i32, i32
  }
  func.func @transform_3(%arg0: i32) -> (i32, i32) {
    %c0_i32 = arith.constant 0 : i32
    %c0_i32_0 = arith.constant 0 : i32
    %c0_i32_1 = arith.constant 0 : i32
    return %c0_i32, %c0_i32_0 : i32, i32
  }
  func.func @transform_4(%arg0: i32) -> (i32, i32) {
    %c0_i32 = arith.constant 0 : i32
    %c0_i32_0 = arith.constant 0 : i32
    %c0_i32_1 = arith.constant 0 : i32
    return %c0_i32, %c0_i32_0 : i32, i32
  }
  func.func @transform_5(%arg0: i32) -> (i32, i32) {
    %c0_i32 = arith.constant 0 : i32
    %c0_i32_0 = arith.constant 0 : i32
    %c0_i32_1 = arith.constant 0 : i32
    return %c0_i32, %c0_i32_0 : i32, i32
  }
  func.func @transform_6(%arg0: i32) -> (i32, i32) {
    %c0_i32 = arith.constant 0 : i32
    %c0_i32_0 = arith.constant 0 : i32
    return %arg0, %c0_i32 : i32, i32
  }
}

</mosaic_0001>

<llo_original>
// kernel: tpu_custom_call.1
$region0: #{tpu_custom_call.1}
  #allocation0 [shape = 'u32[]', space=smem, size = 0x4, offset = 0x4, fixed_abs, tag = 'smem constant byte address 0x4 - core index']
  #allocation1 [shape = 'u32[72,128]{1,0:T(1,128)}', space=vmem, size = 0x9000, scoped, tag = 'internal scratch']
  %s0 = inlined_call_operand.hbm [shape: f32[48,64], index: 0, kind: input, shape index: {}]
  %s1 = inlined_call_operand.hbm [shape: bf16[64,256], index: 1, kind: input, shape index: {}]
  %s2 = inlined_call_operand.hbm [shape: bf16[5,256,256], index: 2, kind: input, shape index: {}]
  %s3 = inlined_call_operand.hbm [shape: bf16[256,128], index: 3, kind: input, shape index: {}]
  %s4 = inlined_call_operand.hbm [shape: f32[6,256], index: 4, kind: input, shape index: {}]
  %s5 = inlined_call_operand.vmem [shape: f32[1,128], index: 5, kind: input, shape index: {}]
  %s6 = inlined_call_operand.hbm [shape: f32[48,128], index: 6, kind: output, shape index: {}]
  %s7 = sld [smem:[#allocation0]]
  $region77: #{tpu_custom_call.1} parent=0
    _
  %s9 = ssub.s32 1, %s7
  %s10 = scalar_select 0, %s9, %s7
  $region1: #{tpu_custom_call.1} parent=0
    #allocation2 [shape = 'u8[16384]{0}', space=vmem, size = 0x4000, scoped, tag = 'input window, operand 0']
    #allocation3 [shape = 's32[2]{0}', space=sflag, size = 0x8, scoped, tag = 'scoped memory for tpu_custom_call.1']
    #allocation4 [shape = 's32[2]{0}', space=sflag, size = 0x8, scoped, tag = 'scoped memory for tpu_custom_call.1']
    #allocation5 [shape = 'u8[32768]{0}', space=vmem, size = 0x8000, scoped, tag = 'input window, operand 1, single buffered']
    #allocation6 [shape = 's32[1]{0}', space=sflag, size = 0x4, scoped, tag = 'scoped memory for tpu_custom_call.1']
    #allocation7 [shape = 'u8[655360]{0}', space=vmem, size = 0xa0000, scoped, tag = 'input window, operand 2, single buffered']
    #allocation8 [shape = 'u8[65536]{0}', space=vmem, size = 0x10000, scoped, tag = 'input window, operand 3, single buffered']
    #allocation9 [shape = 's32[1]{0}', space=sflag, size = 0x4, scoped, tag = 'scoped memory for tpu_custom_call.1']
    #allocation10 [shape = 'u8[8192]{0}', space=vmem, size = 0x2000, scoped, tag = 'input window, operand 4, single buffered']
    #allocation11 [shape = 'u8[16384]{0}', space=vmem, size = 0x4000, scoped, tag = 'output window, operand 0']
    %11 = vsyncpa [#allocation3], 0
    %s12 = scalar_lea.sflag [#allocation3], 1
    %13 = vsyncpa %s12, 0
    %14 = vsyncpa [#allocation6], 0
    %15 = vsyncpa [#allocation9], 0
    %16 = vsyncpa [#allocation4], 0
    %s17 = scalar_lea.sflag [#allocation4], 1
    %18 = vsyncpa %s17, 0
    loop: start=0, step=1, limit=5
    $region2: #{tpu_custom_call.1} parent=1 // loop_pre_header
      _
    $region3: #{tpu_custom_call.1} parent=1 // loop_header
      %s20 = sphi 0, %s24
      %p21 = scmp.ge.s32.totalorder %s20, 5
      %s30 = sphi 0, %s32
      %s33 = sphi 0, %s30
      %s34 = sphi 0, %s33
      %s50 = sphi 0, %s34
      %s54 = sphi 0, %s54
      %s56 = sphi 0, %s54
      %s57 = sphi 0, %s56
      %s71 = sphi 0, %s57
      %s75 = sphi 0, %s75
      %s77 = sphi 0, %s75
      %s78 = sphi 0, %s77
      %s92 = sphi 0, %s78
      %s96 = sphi 0, %s96
      %s98 = sphi 0, %s96
      %s99 = sphi 0, %s98
      %s113 = sphi 0, %s99
      %s117 = sphi 0, %s117
      %s119 = sphi 0, %s117
      %s120 = sphi 0, %s119
      %s134 = sphi 0, %s120
      %s138 = sphi 0, %s138
      %s140 = sphi 0, %s138
      %s141 = sphi 0, %s140
      %s155 = sphi 0, %s141
      %s161 = sphi 0, %s163
      %s164 = sphi 0, %s161
      %s165 = sphi 0, %s164
      %s181 = sphi 0, %s165
    $region4: #{tpu_custom_call.1} parent=1 // loop_header_branch
      %23 = sbr.rel (%p21) target = $region8
    $region5: #{tpu_custom_call.1} parent=1 // loop_body
      %s25 = ssub.s32 %s20, 1
      %s26 = ssub.s32 %s20, 2
      %s27 = sadd.s32 %s20, 1
      %s28 = ssub.s32 %s20, %s27
      %p29 = scmp.eq.s32.totalorder %s28, 0
      %s31 = sadd.s32 %s30, 1
      %s32 = scalar_select %p29, %s30, %s31
      %p35 = pneg %p29
      %p36 = scmp.eq.s32.totalorder %s20, 2
      %p37 = por %p35, %p36
      %p38 = scmp.ne.s32.totalorder %s30, %s33
      %p39 = scmp.eq.s32.totalorder %s20, 0
      %p40 = por %p38, %p39
      %p41 = scmp.ne.s32.totalorder %s30, %s33
      %p42 = scmp.eq.s32.totalorder %s25, 2
      %p43 = por %p41, %p42
      %p44 = scmp.ne.s32.totalorder %s33, %s34
      %p45 = scmp.eq.s32.totalorder %s25, 0
      %p46 = por %p44, %p45
      %p47 = scmp.ne.s32.totalorder %s33, %s34
      %p48 = scmp.eq.s32.totalorder %s26, 2
      %p49 = por %p47, %p48
      %p51 = scmp.ne.s32.totalorder %s34, %s50
      %p52 = scmp.eq.s32.totalorder %s26, 0
      %p53 = por %p51, %p52
      %s55 = sadd.s32 %s54, 1
      %p58 = scmp.eq.s32.totalorder %s20, 2
      %p59 = scmp.ne.s32.totalorder %s54, %s56
      %p60 = scmp.eq.s32.totalorder %s20, 0
      %p61 = por %p59, %p60
      %p62 = scmp.ne.s32.totalorder %s54, %s56
      %p63 = scmp.eq.s32.totalorder %s25, 2
      %p64 = por %p62, %p63
      %p65 = scmp.ne.s32.totalorder %s56, %s57
      %p66 = scmp.eq.s32.totalorder %s25, 0
      %p67 = por %p65, %p66
      %p68 = scmp.ne.s32.totalorder %s56, %s57
      %p69 = scmp.eq.s32.totalorder %s26, 2
      %p70 = por %p68, %p69
      %p72 = scmp.ne.s32.totalorder %s57, %s71
      %p73 = scmp.eq.s32.totalorder %s26, 0
      %p74 = por %p72, %p73
      %s76 = sadd.s32 %s75, 1
      %p79 = scmp.eq.s32.totalorder %s20, 2
      %p80 = scmp.ne.s32.totalorder %s75, %s77
      %p81 = scmp.eq.s32.totalorder %s20, 0
      %p82 = por %p80, %p81
      %p83 = scmp.ne.s32.totalorder %s75, %s77
      %p84 = scmp.eq.s32.totalorder %s25, 2
      %p85 = por %p83, %p84
      %p86 = scmp.ne.s32.totalorder %s77, %s78
      %p87 = scmp.eq.s32.totalorder %s25, 0
      %p88 = por %p86, %p87
      %p89 = scmp.ne.s32.totalorder %s77, %s78
      %p90 = scmp.eq.s32.totalorder %s26, 2
      %p91 = por %p89, %p90
      %p93 = scmp.ne.s32.totalorder %s78, %s92
      %p94 = scmp.eq.s32.totalorder %s26, 0
      %p95 = por %p93, %p94
      %s97 = sadd.s32 %s96, 1
      %p100 = scmp.eq.s32.totalorder %s20, 2
      %p101 = scmp.ne.s32.totalorder %s96, %s98
      %p102 = scmp.eq.s32.totalorder %s20, 0
      %p103 = por %p101, %p102
      %p104 = scmp.ne.s32.totalorder %s96, %s98
      %p105 = scmp.eq.s32.totalorder %s25, 2
      %p106 = por %p104, %p105
      %p107 = scmp.ne.s32.totalorder %s98, %s99
      %p108 = scmp.eq.s32.totalorder %s25, 0
      %p109 = por %p107, %p108
      %p110 = scmp.ne.s32.totalorder %s98, %s99
      %p111 = scmp.eq.s32.totalorder %s26, 2
      %p112 = por %p110, %p111
      %p114 = scmp.ne.s32.totalorder %s99, %s113
      %p115 = scmp.eq.s32.totalorder %s26, 0
      %p116 = por %p114, %p115
      %s118 = sadd.s32 %s117, 1
      %p121 = scmp.eq.s32.totalorder %s20, 2
      %p122 = scmp.ne.s32.totalorder %s117, %s119
      %p123 = scmp.eq.s32.totalorder %s20, 0
      %p124 = por %p122, %p123
      %p125 = scmp.ne.s32.totalorder %s117, %s119
      %p126 = scmp.eq.s32.totalorder %s25, 2
      %p127 = por %p125, %p126
      %p128 = scmp.ne.s32.totalorder %s119, %s120
      %p129 = scmp.eq.s32.totalorder %s25, 0
      %p130 = por %p128, %p129
      %p131 = scmp.ne.s32.totalorder %s119, %s120
      %p132 = scmp.eq.s32.totalorder %s26, 2
      %p133 = por %p131, %p132
      %p135 = scmp.ne.s32.totalorder %s120, %s134
      %p136 = scmp.eq.s32.totalorder %s26, 0
      %p137 = por %p135, %p136
      %s139 = sadd.s32 %s138, 1
      %p142 = scmp.eq.s32.totalorder %s20, 2
      %p143 = scmp.ne.s32.totalorder %s138, %s140
      %p144 = scmp.eq.s32.totalorder %s20, 0
      %p145 = por %p143, %p144
      %p146 = scmp.ne.s32.totalorder %s138, %s140
      %p147 = scmp.eq.s32.totalorder %s25, 2
      %p148 = por %p146, %p147
      %p149 = scmp.ne.s32.totalorder %s140, %s141
      %p150 = scmp.eq.s32.totalorder %s25, 0
      %p151 = por %p149, %p150
      %p152 = scmp.ne.s32.totalorder %s140, %s141
      %p153 = scmp.eq.s32.totalorder %s26, 2
      %p154 = por %p152, %p153
      %p156 = scmp.ne.s32.totalorder %s141, %s155
      %p157 = scmp.eq.s32.totalorder %s26, 0
      %p158 = por %p156, %p157
      %s159 = ssub.s32 %s20, %s27
      %p160 = scmp.eq.s32.totalorder %s159, 0
      %s162 = sadd.s32 %s161, 1
      %s163 = scalar_select %p160, %s161, %s162
      %p166 = pneg %p160
      %p167 = scmp.eq.s32.totalorder %s20, 2
      %p168 = por %p166, %p167
      %p169 = scmp.ne.s32.totalorder %s161, %s164
      %p170 = scmp.eq.s32.totalorder %s20, 0
      %p171 = por %p169, %p170
      %p172 = scmp.ne.s32.totalorder %s161, %s164
      %p173 = scmp.eq.s32.totalorder %s25, 2
      %p174 = por %p172, %p173
      %p175 = scmp.ne.s32.totalorder %s164, %s165
      %p176 = scmp.eq.s32.totalorder %s25, 0
      %p177 = por %p175, %p176
      %p178 = scmp.ne.s32.totalorder %s164, %s165
      %p179 = scmp.eq.s32.totalorder %s26, 2
      %p180 = por %p178, %p179
      %p182 = scmp.ne.s32.totalorder %s165, %s181
      %p183 = scmp.eq.s32.totalorder %s26, 0
      %p184 = por %p182, %p183
      %p185 = scmp.le.s32.totalorder 1, %s20
      %p186 = scmp.lt.s32.totalorder %s20, 4
      %p187 = pnand %p185, %p186
      %p188 = pneg %p187
      // Predicated region
      $region9: #{tpu_custom_call.1} parent=5 // pred_check
        _
      $region10: #{tpu_custom_call.1} parent=5 // pred_check_branch
        %190 = sbr.rel (%p187) target = $region12
      $region11: #{tpu_custom_call.1} parent=5 // pred_region
        %s191 = ssub.s32 %s20, 1
        // Predicated region
        $region13: #{tpu_custom_call.1} parent=11 // pred_check
          %p192 = pneg %p67
        $region14: #{tpu_custom_call.1} parent=11 // pred_check_branch
          %194 = sbr.rel (%p192) target = $region16
        $region15: #{tpu_custom_call.1} parent=11 // pred_region
          %196 = vsyncadd [#allocation6], 0
          %s197 = sshll.u32 %s1, 4
          %s198 = int_to_ptr.hbm [resolvable:$true] %s197
          %s199 = sshll.u32 [#allocation5], 4
          %s200 = int_to_ptr.vmem [resolvable:$true] %s199
          %205 = dma.hbm_to_vmem [thread:$0]  %s198, 1024, %s200, [#allocation6], 128, 128, 8
        $region16: #{tpu_custom_call.1} parent=11 // pred_fallthru
          _
        // Predicated region
        $region17: #{tpu_custom_call.1} parent=11 // pred_check
          %p206 = pneg %p88
        $region18: #{tpu_custom_call.1} parent=11 // pred_check_branch
          %208 = sbr.rel (%p206) target = $region20
        $region19: #{tpu_custom_call.1} parent=11 // pred_region
          %210 = vsyncadd [#allocation6], 0
          %s211 = sshll.u32 %s2, 4
          %s212 = int_to_ptr.hbm [resolvable:$true] %s211
          %s213 = sshll.u32 [#allocation7], 4
          %s214 = int_to_ptr.vmem [resolvable:$true] %s213
          %219 = dma.hbm_to_vmem [thread:$0]  %s212, 20480, %s214, [#allocation6], 128, 128, 8
        $region20: #{tpu_custom_call.1} parent=11 // pred_fallthru
          _
        // Predicated region
        $region21: #{tpu_custom_call.1} parent=11 // pred_check
          %p220 = pneg %p109
        $region22: #{tpu_custom_call.1} parent=11 // pred_check_branch
          %222 = sbr.rel (%p220) target = $region24
        $region23: #{tpu_custom_call.1} parent=11 // pred_region
          %224 = vsyncadd [#allocation9], 0
          %s225 = sshll.u32 %s3, 4
          %s226 = int_to_ptr.hbm [resolvable:$true] %s225
          %s227 = sshll.u32 [#allocation8], 4
          %s228 = int_to_ptr.vmem [resolvable:$true] %s227
          %233 = dma.hbm_to_vmem [thread:$0]  %s226, 2048, %s228, [#allocation9], 64, 64, 4
        $region24: #{tpu_custom_call.1} parent=11 // pred_fallthru
          _
        // Predicated region
        $region25: #{tpu_custom_call.1} parent=11 // pred_check
          %p234 = pneg %p130
        $region26: #{tpu_custom_call.1} parent=11 // pred_check_branch
          %236 = sbr.rel (%p234) target = $region28
        $region27: #{tpu_custom_call.1} parent=11 // pred_region
          %238 = vsyncadd [#allocation9], 0
          %s240 = sshll.u32 %s4, 4
          %s241 = int_to_ptr.hbm [resolvable:$true] %s240
          %s242 = sshll.u32 [#allocation10], 4
          %s243 = int_to_ptr.vmem [resolvable:$true] %s242
          %245 = dma.hbm_to_vmem [thread:$0]  %s241, 256, %s243, [#allocation9]
        $region28: #{tpu_custom_call.1} parent=11 // pred_fallthru
          _
        // Predicated region
        $region29: #{tpu_custom_call.1} parent=11 // pred_check
          %p246 = pneg %p151
        $region30: #{tpu_custom_call.1} parent=11 // pred_check_branch
          %248 = sbr.rel (%p246) target = $region32
        $region31: #{tpu_custom_call.1} parent=11 // pred_region
          _
        $region32: #{tpu_custom_call.1} parent=11 // pred_fallthru
          _
      $region12: #{tpu_custom_call.1} parent=5 // pred_fallthru
        _
      %p249 = scmp.lt.s32.totalorder %s20, 3
      // Predicated region
      $region33: #{tpu_custom_call.1} parent=5 // pred_check
        %p250 = pneg %p249
      $region34: #{tpu_custom_call.1} parent=5 // pred_check_branch
        %252 = sbr.rel (%p250) target = $region36
      $region35: #{tpu_custom_call.1} parent=5 // pred_region
        // Predicated region
        $region37: #{tpu_custom_call.1} parent=35 // pred_check
          %p253 = pneg %p40
        $region38: #{tpu_custom_call.1} parent=35 // pred_check_branch
          %255 = sbr.rel (%p253) target = $region40
        $region39: #{tpu_custom_call.1} parent=35 // pred_region
          %s256 = sand.u32 %s30, 1
          %s257 = scalar_lea.sflag [#allocation3], %s256
          %s258 = sand.u32 %s30, 1
          %s259 = smul.addr %s258, 16
          %s260 = scalar_lea.vmem [#allocation2], %s259
          %s261 = smul.u32 2, %s20
          %263 = vsyncadd %s257, 0
          %s264 = smul.addr %s261, 8
          %s265 = scalar_lea.hbm %s0, %s264
          %s266 = sshll.u32 %s265, 4
          %s267 = int_to_ptr.hbm [resolvable:$true] %s266
          %s268 = sshll.u32 %s260, 4
          %s269 = int_to_ptr.vmem [resolvable:$true] %s268
          %274 = dma.hbm_to_vmem [thread:$0]  %s267, 256, %s269, %s257, 128, 128, 8
        $region40: #{tpu_custom_call.1} parent=35 // pred_fallthru
          _
      $region36: #{tpu_custom_call.1} parent=5 // pred_fallthru
        _
      %p275 = scmp.le.s32.totalorder 1, %s20
      %p276 = scmp.lt.s32.totalorder %s20, 4
      %p277 = pnand %p275, %p276
      %p278 = pneg %p277
      // Predicated region
      $region41: #{tpu_custom_call.1} parent=5 // pred_check
        _
      $region42: #{tpu_custom_call.1} parent=5 // pred_check_branch
        %280 = sbr.rel (%p277) target = $region44
      $region43: #{tpu_custom_call.1} parent=5 // pred_region
        %s281 = ssub.s32 %s20, 1
        %s282 = sand.u32 %s33, 1
        %s283 = scalar_lea.sflag [#allocation3], %s282
        %s284 = sand.u32 %s33, 1
        %s285 = smul.addr %s284, 16
        %s286 = scalar_lea.vmem [#allocation2], %s285
        // Predicated region
        $region45: #{tpu_custom_call.1} parent=43 // pred_check
          %p287 = pneg %p46
        $region46: #{tpu_custom_call.1} parent=43 // pred_check_branch
          %289 = sbr.rel (%p287) target = $region48
        $region47: #{tpu_custom_call.1} parent=43 // pred_region
          %291 = dma.done %s283, 256
        $region48: #{tpu_custom_call.1} parent=43 // pred_fallthru
          _
        // Predicated region
        $region49: #{tpu_custom_call.1} parent=43 // pred_check
          %p292 = pneg %p67
        $region50: #{tpu_custom_call.1} parent=43 // pred_check_branch
          %294 = sbr.rel (%p292) target = $region52
        $region51: #{tpu_custom_call.1} parent=43 // pred_region
          %296 = dma.done [#allocation6], 1024
        $region52: #{tpu_custom_call.1} parent=43 // pred_fallthru
          _
        // Predicated region
        $region53: #{tpu_custom_call.1} parent=43 // pred_check
          %p297 = pneg %p88
        $region54: #{tpu_custom_call.1} parent=43 // pred_check_branch
          %299 = sbr.rel (%p297) target = $region56
        $region55: #{tpu_custom_call.1} parent=43 // pred_region
          %301 = dma.done [#allocation6], 20480
        $region56: #{tpu_custom_call.1} parent=43 // pred_fallthru
          _
        // Predicated region
        $region57: #{tpu_custom_call.1} parent=43 // pred_check
          %p302 = pneg %p109
        $region58: #{tpu_custom_call.1} parent=43 // pred_check_branch
          %304 = sbr.rel (%p302) target = $region60
        $region59: #{tpu_custom_call.1} parent=43 // pred_region
          %306 = dma.done [#allocation9], 2048
        $region60: #{tpu_custom_call.1} parent=43 // pred_fallthru
          _
        // Predicated region
        $region61: #{tpu_custom_call.1} parent=43 // pred_check
          %p307 = pneg %p130
        $region62: #{tpu_custom_call.1} parent=43 // pred_check_branch
          %309 = sbr.rel (%p307) target = $region64
        $region63: #{tpu_custom_call.1} parent=43 // pred_region
          %311 = dma.done [#allocation9], 256
        $region64: #{tpu_custom_call.1} parent=43 // pred_fallthru
          _
        %s312 = sand.u32 %s33, 1
        %s313 = scalar_lea.sflag [#allocation3], %s312
        %s314 = sand.u32 %s33, 1
        %s315 = smul.addr %s314, 16
        %s316 = scalar_lea.vmem [#allocation2], %s315
        %p317 = pneg %p46
        %p318 = pneg %p43
        %p319 = pneg %p67
        %p320 = pneg %p64
        %p321 = pneg %p88
        %p322 = pneg %p85
        %p323 = pneg %p109
        %p324 = pneg %p106
        %p325 = pneg %p130
        %p326 = pneg %p127
        %p327 = pneg %p151
        %p328 = pneg %p148
        %p329 = pneg %p177
        %p330 = pneg %p174
        %s331 = sand.u32 %s164, 1
        %s332 = scalar_lea.sflag [#allocation4], %s331
        %s333 = sand.u32 %s164, 1
        %s334 = smul.addr %s333, 16
        %s335 = scalar_lea.vmem [#allocation11], %s334
        %s336 = smul.u32 2, %s25
        %s337 = smul.u32 2, %s25
        %v339 = vld [vmem:[#allocation10] sm:$0x3f]
        %v340 = vld [vmem:[#allocation10 + $0x8] sm:$0x3f]
        %v341 = vld [vmem:[%s286] sm:$0xff]
        %v342 = vld [vmem:[%s286 + $0x8] sm:$0xff]
        %v343 = vld [vmem:[#allocation5] sm:$0xff]
        %v344 = vld [vmem:[#allocation5 + $0x8] sm:$0xff]
        %v345 = vld [vmem:[#allocation5 + $0x10] sm:$0xff]
        %v346 = vld [vmem:[#allocation5 + $0x18] sm:$0xff]
        %v347 = vld [vmem:[#allocation5 + $0x20] sm:$0xff]
        %v348 = vld [vmem:[#allocation5 + $0x28] sm:$0xff]
        %v349 = vld [vmem:[#allocation5 + $0x30] sm:$0xff]
        %v350 = vld [vmem:[#allocation5 + $0x38] sm:$0xff]
        %v351 = vpack.c.bf16 %v342, %v341
        %v352 = vperm.slane %v339, 0
        %v353 = vperm.slane %v340, 0
        %v362 = vunpack.c.l.b16 %v343
        %v363 = vunpack.c.h.b16 %v343
        %v364 = vunpack.c.l.b16 %v344
        %v365 = vunpack.c.h.b16 %v344
        %v366 = vunpack.c.l.b16 %v345
        %v367 = vunpack.c.h.b16 %v345
        %v368 = vunpack.c.l.b16 %v346
        %v369 = vunpack.c.h.b16 %v346
        %v370 = vunpack.c.l.b16 %v347
        %v371 = vunpack.c.h.b16 %v347
        %v372 = vunpack.c.l.b16 %v348
        %v373 = vunpack.c.h.b16 %v348
        %v374 = vunpack.c.l.b16 %v349
        %v375 = vunpack.c.h.b16 %v349
        %v376 = vunpack.c.l.b16 %v350
        %v377 = vunpack.c.h.b16 %v350
        %v378 = vpack.c.b16 %v364, %v362
        %v379 = vpack.c.b16 %v365, %v363
        %v380 = vpack.c.b16 %v368, %v366
        %v381 = vpack.c.b16 %v369, %v367
        %v382 = vpack.c.b16 %v372, %v370
        %v383 = vpack.c.b16 %v373, %v371
        %v384 = vpack.c.b16 %v376, %v374
        %v385 = vpack.c.b16 %v377, %v375
        %vm394 = vcmask 523264
        %v396 = vsel %vm394, %v351, 0
        %398 = vmatpush.bf16.msra.mxu0 0
        %399 = vmatpush.bf16.msra.mxu0 0
        %400 = vmatpush.bf16.msra.mxu0 0
        %401 = vmatpush.bf16.msra.mxu0 0
        %402 = vmatpush.bf16.msra.mxu0 %v384
        %403 = vmatpush.bf16.msra.mxu0 %v382
        %404 = vmatpush.bf16.msra.mxu0 %v380
        %405 = vmatpush.bf16.msra.mxu0 %v378
        %406 = vmatmul.bf16.gmra.mxu0 %v396
        %v407 = vpop.f32.mrf.mxu0
        %v408 = vadd.f32 %v352, %v407
        %v409 = vpop.f32.mrf.mxu0
        %v410 = vadd.f32 %v352, %v409
        %411 = vdwg.mxu0
        %412 = vmatpush.bf16.msra.mxu0 0
        %413 = vmatpush.bf16.msra.mxu0 0
        %414 = vmatpush.bf16.msra.mxu0 0
        %415 = vmatpush.bf16.msra.mxu0 0
        %416 = vmatpush.bf16.msra.mxu0 %v385
        %417 = vmatpush.bf16.msra.mxu0 %v383
        %418 = vmatpush.bf16.msra.mxu0 %v381
        %419 = vmatpush.bf16.msra.mxu0 %v379
        %420 = vmatmul.bf16.gmra.mxu0 %v396
        %v421 = vpop.f32.mrf.mxu0
        %v422 = vadd.f32 %v353, %v421
        %v423 = vpop.f32.mrf.mxu0
        %v424 = vadd.f32 %v353, %v423
        %425 = vdwg.mxu0
        %v426 = vmax.f32 %v408, 0.0
        %v427 = vmax.f32 %v422, 0.0
        %v428 = vmax.f32 %v410, 0.0
        %v429 = vmax.f32 %v424, 0.0
        %v430 = vld [vmem:[#allocation7] sm:$0xff]
        %v431 = vld [vmem:[#allocation7 + $0x8] sm:$0xff]
        %v432 = vld [vmem:[#allocation7 + $0x10] sm:$0xff]
        %v433 = vld [vmem:[#allocation7 + $0x18] sm:$0xff]
        %v434 = vld [vmem:[#allocation7 + $0x20] sm:$0xff]
        %v435 = vld [vmem:[#allocation7 + $0x28] sm:$0xff]
        %v436 = vld [vmem:[#allocation7 + $0x30] sm:$0xff]
        %v437 = vld [vmem:[#allocation7 + $0x38] sm:$0xff]
        %v438 = vld [vmem:[#allocation7 + $0x40] sm:$0xff]
        %v439 = vld [vmem:[#allocation7 + $0x48] sm:$0xff]
        %v440 = vld [vmem:[#allocation7 + $0x50] sm:$0xff]
        %v441 = vld [vmem:[#allocation7 + $0x58] sm:$0xff]
        %v442 = vld [vmem:[#allocation7 + $0x60] sm:$0xff]
        %v443 = vld [vmem:[#allocation7 + $0x68] sm:$0xff]
        %v444 = vld [vmem:[#allocation7 + $0x70] sm:$0xff]
        %v445 = vld [vmem:[#allocation7 + $0x78] sm:$0xff]
        %v446 = vld [vmem:[#allocation7 + $0x80] sm:$0xff]
        %v447 = vld [vmem:[#allocation7 + $0x88] sm:$0xff]
        %v448 = vld [vmem:[#allocation7 + $0x90] sm:$0xff]
        %v449 = vld [vmem:[#allocation7 + $0x98] sm:$0xff]
        %v450 = vld [vmem:[#allocation7 + $0xa0] sm:$0xff]
        %v451 = vld [vmem:[#allocation7 + $0xa8] sm:$0xff]
        %v452 = vld [vmem:[#allocation7 + $0xb0] sm:$0xff]
        %v453 = vld [vmem:[#allocation7 + $0xb8] sm:$0xff]
        %v454 = vld [vmem:[#allocation7 + $0xc0] sm:$0xff]
        %v455 = vld [vmem:[#allocation7 + $0xc8] sm:$0xff]
        %v456 = vld [vmem:[#allocation7 + $0xd0] sm:$0xff]
        %v457 = vld [vmem:[#allocation7 + $0xd8] sm:$0xff]
        %v458 = vld [vmem:[#allocation7 + $0xe0] sm:$0xff]
        %v459 = vld [vmem:[#allocation7 + $0xe8] sm:$0xff]
        %v460 = vld [vmem:[#allocation7 + $0xf0] sm:$0xff]
        %v461 = vld [vmem:[#allocation7 + $0xf8] sm:$0xff]
        %v462 = vpack.c.bf16 %v428, %v426
        %v463 = vpack.c.bf16 %v429, %v427
        %v464 = vperm.slane %v339, 1
        %v465 = vperm.slane %v340, 1
        %v498 = vunpack.c.l.b16 %v430
        %v499 = vunpack.c.h.b16 %v430
        %v500 = vunpack.c.l.b16 %v431
        %v501 = vunpack.c.h.b16 %v431
        %v502 = vunpack.c.l.b16 %v432
        %v503 = vunpack.c.h.b16 %v432
        %v504 = vunpack.c.l.b16 %v433
        %v505 = vunpack.c.h.b16 %v433
        %v506 = vunpack.c.l.b16 %v434
        %v507 = vunpack.c.h.b16 %v434
        %v508 = vunpack.c.l.b16 %v435
        %v509 = vunpack.c.h.b16 %v435
        %v510 = vunpack.c.l.b16 %v436
        %v511 = vunpack.c.h.b16 %v436
        %v512 = vunpack.c.l.b16 %v437
        %v513 = vunpack.c.h.b16 %v437
        %v514 = vunpack.c.l.b16 %v438
        %v515 = vunpack.c.h.b16 %v438
        %v516 = vunpack.c.l.b16 %v439
        %v517 = vunpack.c.h.b16 %v439
        %v518 = vunpack.c.l.b16 %v440
        %v519 = vunpack.c.h.b16 %v440
        %v520 = vunpack.c.l.b16 %v441
        %v521 = vunpack.c.h.b16 %v441
        %v522 = vunpack.c.l.b16 %v442
        %v523 = vunpack.c.h.b16 %v442
        %v524 = vunpack.c.l.b16 %v443
        %v525 = vunpack.c.h.b16 %v443
        %v526 = vunpack.c.l.b16 %v444
        %v527 = vunpack.c.h.b16 %v444
        %v528 = vunpack.c.l.b16 %v445
        %v529 = vunpack.c.h.b16 %v445
        %v530 = vunpack.c.l.b16 %v446
        %v531 = vunpack.c.h.b16 %v446
        %v532 = vunpack.c.l.b16 %v447
        %v533 = vunpack.c.h.b16 %v447
        %v534 = vunpack.c.l.b16 %v448
        %v535 = vunpack.c.h.b16 %v448
        %v536 = vunpack.c.l.b16 %v449
        %v537 = vunpack.c.h.b16 %v449
        %v538 = vunpack.c.l.b16 %v450
        %v539 = vunpack.c.h.b16 %v450
        %v540 = vunpack.c.l.b16 %v451
        %v541 = vunpack.c.h.b16 %v451
        %v542 = vunpack.c.l.b16 %v452
        %v543 = vunpack.c.h.b16 %v452
        %v544 = vunpack.c.l.b16 %v453
        %v545 = vunpack.c.h.b16 %v453
        %v546 = vunpack.c.l.b16 %v454
        %v547 = vunpack.c.h.b16 %v454
        %v548 = vunpack.c.l.b16 %v455
        %v549 = vunpack.c.h.b16 %v455
        %v550 = vunpack.c.l.b16 %v456
        %v551 = vunpack.c.h.b16 %v456
        %v552 = vunpack.c.l.b16 %v457
        %v553 = vunpack.c.h.b16 %v457
        %v554 = vunpack.c.l.b16 %v458
        %v555 = vunpack.c.h.b16 %v458
        %v556 = vunpack.c.l.b16 %v459
        %v557 = vunpack.c.h.b16 %v459
        %v558 = vunpack.c.l.b16 %v460
        %v559 = vunpack.c.h.b16 %v460
        %v560 = vunpack.c.l.b16 %v461
        %v561 = vunpack.c.h.b16 %v461
        %v562 = vpack.c.b16 %v500, %v498
        %v563 = vpack.c.b16 %v501, %v499
        %v564 = vpack.c.b16 %v504, %v502
        %v565 = vpack.c.b16 %v505, %v503
        %v566 = vpack.c.b16 %v508, %v506
        %v567 = vpack.c.b16 %v509, %v507
        %v568 = vpack.c.b16 %v512, %v510
        %v569 = vpack.c.b16 %v513, %v511
        %v570 = vpack.c.b16 %v516, %v514
        %v571 = vpack.c.b16 %v517, %v515
        %v572 = vpack.c.b16 %v520, %v518
        %v573 = vpack.c.b16 %v521, %v519
        %v574 = vpack.c.b16 %v524, %v522
        %v575 = vpack.c.b16 %v525, %v523
        %v576 = vpack.c.b16 %v528, %v526
        %v577 = vpack.c.b16 %v529, %v527
        %v578 = vpack.c.b16 %v532, %v530
        %v579 = vpack.c.b16 %v533, %v531
        %v580 = vpack.c.b16 %v536, %v534
        %v581 = vpack.c.b16 %v537, %v535
        %v582 = vpack.c.b16 %v540, %v538
        %v583 = vpack.c.b16 %v541, %v539
        %v584 = vpack.c.b16 %v544, %v542
        %v585 = vpack.c.b16 %v545, %v543
        %v586 = vpack.c.b16 %v548, %v546
        %v587 = vpack.c.b16 %v549, %v547
        %v588 = vpack.c.b16 %v552, %v550
        %v589 = vpack.c.b16 %v553, %v551
        %v590 = vpack.c.b16 %v556, %v554
        %v591 = vpack.c.b16 %v557, %v555
        %v592 = vpack.c.b16 %v560, %v558
        %v593 = vpack.c.b16 %v561, %v559
        %626 = vmatpush.bf16.msra.mxu0 %v576
        %627 = vmatpush.bf16.msra.mxu0 %v574
        %628 = vmatpush.bf16.msra.mxu0 %v572
        %629 = vmatpush.bf16.msra.mxu0 %v570
        %630 = vmatpush.bf16.msra.mxu0 %v568
        %631 = vmatpush.bf16.msra.mxu0 %v566
        %632 = vmatpush.bf16.msra.mxu0 %v564
        %633 = vmatpush.bf16.msra.mxu0 %v562
        %634 = vmatmul.bf16.gmra.mxu0 %v462
        %v635 = vpop.f32.mrf.mxu0
        %v636 = vadd.f32 %v464, %v635
        %v637 = vpop.f32.mrf.mxu0
        %v638 = vadd.f32 %v464, %v637
        %639 = vdwg.mxu0
        %640 = vmatpush.bf16.msra.mxu0 %v592
        %641 = vmatpush.bf16.msra.mxu0 %v590
        %642 = vmatpush.bf16.msra.mxu0 %v588
        %643 = vmatpush.bf16.msra.mxu0 %v586
        %644 = vmatpush.bf16.msra.mxu0 %v584
        %645 = vmatpush.bf16.msra.mxu0 %v582
        %646 = vmatpush.bf16.msra.mxu0 %v580
        %647 = vmatpush.bf16.msra.mxu0 %v578
        %648 = vmatmul.bf16.gmra.mxu0 %v463
        %v649 = vpop.f32.mrf.mxu0
        %v650 = vadd.f32 %v636, %v649
        %v651 = vpop.f32.mrf.mxu0
        %v652 = vadd.f32 %v638, %v651
        %653 = vdwg.mxu0
        %654 = vmatpush.bf16.msra.mxu0 %v577
        %655 = vmatpush.bf16.msra.mxu0 %v575
        %656 = vmatpush.bf16.msra.mxu0 %v573
        %657 = vmatpush.bf16.msra.mxu0 %v571
        %658 = vmatpush.bf16.msra.mxu0 %v569
        %659 = vmatpush.bf16.msra.mxu0 %v567
        %660 = vmatpush.bf16.msra.mxu0 %v565
        %661 = vmatpush.bf16.msra.mxu0 %v563
        %662 = vmatmul.bf16.gmra.mxu0 %v462
        %v663 = vpop.f32.mrf.mxu0
        %v664 = vadd.f32 %v465, %v663
        %v665 = vpop.f32.mrf.mxu0
        %v666 = vadd.f32 %v465, %v665
        %667 = vdwg.mxu0
        %668 = vmatpush.bf16.msra.mxu0 %v593
        %669 = vmatpush.bf16.msra.mxu0 %v591
        %670 = vmatpush.bf16.msra.mxu0 %v589
        %671 = vmatpush.bf16.msra.mxu0 %v587
        %672 = vmatpush.bf16.msra.mxu0 %v585
        %673 = vmatpush.bf16.msra.mxu0 %v583
        %674 = vmatpush.bf16.msra.mxu0 %v581
        %675 = vmatpush.bf16.msra.mxu0 %v579
        %676 = vmatmul.bf16.gmra.mxu0 %v463
        %v677 = vpop.f32.mrf.mxu0
        %v678 = vadd.f32 %v664, %v677
        %v679 = vpop.f32.mrf.mxu0
        %v680 = vadd.f32 %v666, %v679
        %681 = vdwg.mxu0
        %v682 = vmax.f32 %v650, 0.0
        %v683 = vmax.f32 %v678, 0.0
        %v684 = vmax.f32 %v652, 0.0
        %v685 = vmax.f32 %v680, 0.0
        %v686 = vadd.f32 %v682, %v426
        %v687 = vadd.f32 %v683, %v427
        %v688 = vadd.f32 %v684, %v428
        %v689 = vadd.f32 %v685, %v429
        %s690 = scalar_lea.vmem [#allocation7], 256
        %v691 = vld [vmem:[%s690] sm:$0xff]
        %v692 = vld [vmem:[%s690 + $0x8] sm:$0xff]
        %v693 = vld [vmem:[%s690 + $0x10] sm:$0xff]
        %v694 = vld [vmem:[%s690 + $0x18] sm:$0xff]
        %v695 = vld [vmem:[%s690 + $0x20] sm:$0xff]
        %v696 = vld [vmem:[%s690 + $0x28] sm:$0xff]
        %v697 = vld [vmem:[%s690 + $0x30] sm:$0xff]
        %v698 = vld [vmem:[%s690 + $0x38] sm:$0xff]
        %v699 = vld [vmem:[%s690 + $0x40] sm:$0xff]
        %v700 = vld [vmem:[%s690 + $0x48] sm:$0xff]
        %v701 = vld [vmem:[%s690 + $0x50] sm:$0xff]
        %v702 = vld [vmem:[%s690 + $0x58] sm:$0xff]
        %v703 = vld [vmem:[%s690 + $0x60] sm:$0xff]
        %v704 = vld [vmem:[%s690 + $0x68] sm:$0xff]
        %v705 = vld [vmem:[%s690 + $0x70] sm:$0xff]
        %v706 = vld [vmem:[%s690 + $0x78] sm:$0xff]
        %v707 = vld [vmem:[%s690 + $0x80] sm:$0xff]
        %v708 = vld [vmem:[%s690 + $0x88] sm:$0xff]
        %v709 = vld [vmem:[%s690 + $0x90] sm:$0xff]
        %v710 = vld [vmem:[%s690 + $0x98] sm:$0xff]
        %v711 = vld [vmem:[%s690 + $0xa0] sm:$0xff]
        %v712 = vld [vmem:[%s690 + $0xa8] sm:$0xff]
        %v713 = vld [vmem:[%s690 + $0xb0] sm:$0xff]
        %v714 = vld [vmem:[%s690 + $0xb8] sm:$0xff]
        %v715 = vld [vmem:[%s690 + $0xc0] sm:$0xff]
        %v716 = vld [vmem:[%s690 + $0xc8] sm:$0xff]
        %v717 = vld [vmem:[%s690 + $0xd0] sm:$0xff]
        %v718 = vld [vmem:[%s690 + $0xd8] sm:$0xff]
        %v719 = vld [vmem:[%s690 + $0xe0] sm:$0xff]
        %v720 = vld [vmem:[%s690 + $0xe8] sm:$0xff]
        %v721 = vld [vmem:[%s690 + $0xf0] sm:$0xff]
        %v722 = vld [vmem:[%s690 + $0xf8] sm:$0xff]
        %v723 = vpack.c.bf16 %v688, %v686
        %v724 = vpack.c.bf16 %v689, %v687
        %v725 = vperm.slane %v339, 2
        %v726 = vperm.slane %v340, 2
        %v759 = vunpack.c.l.b16 %v691
        %v760 = vunpack.c.h.b16 %v691
        %v761 = vunpack.c.l.b16 %v692
        %v762 = vunpack.c.h.b16 %v692
        %v763 = vunpack.c.l.b16 %v693
        %v764 = vunpack.c.h.b16 %v693
        %v765 = vunpack.c.l.b16 %v694
        %v766 = vunpack.c.h.b16 %v694
        %v767 = vunpack.c.l.b16 %v695
        %v768 = vunpack.c.h.b16 %v695
        %v769 = vunpack.c.l.b16 %v696
        %v770 = vunpack.c.h.b16 %v696
        %v771 = vunpack.c.l.b16 %v697
        %v772 = vunpack.c.h.b16 %v697
        %v773 = vunpack.c.l.b16 %v698
        %v774 = vunpack.c.h.b16 %v698
        %v775 = vunpack.c.l.b16 %v699
        %v776 = vunpack.c.h.b16 %v699
        %v777 = vunpack.c.l.b16 %v700
        %v778 = vunpack.c.h.b16 %v700
        %v779 = vunpack.c.l.b16 %v701
        %v780 = vunpack.c.h.b16 %v701
        %v781 = vunpack.c.l.b16 %v702
        %v782 = vunpack.c.h.b16 %v702
        %v783 = vunpack.c.l.b16 %v703
        %v784 = vunpack.c.h.b16 %v703
        %v785 = vunpack.c.l.b16 %v704
        %v786 = vunpack.c.h.b16 %v704
        %v787 = vunpack.c.l.b16 %v705
        %v788 = vunpack.c.h.b16 %v705
        %v789 = vunpack.c.l.b16 %v706
        %v790 = vunpack.c.h.b16 %v706
        %v791 = vunpack.c.l.b16 %v707
        %v792 = vunpack.c.h.b16 %v707
        %v793 = vunpack.c.l.b16 %v708
        %v794 = vunpack.c.h.b16 %v708
        %v795 = vunpack.c.l.b16 %v709
        %v796 = vunpack.c.h.b16 %v709
        %v797 = vunpack.c.l.b16 %v710
        %v798 = vunpack.c.h.b16 %v710
        %v799 = vunpack.c.l.b16 %v711
        %v800 = vunpack.c.h.b16 %v711
        %v801 = vunpack.c.l.b16 %v712
        %v802 = vunpack.c.h.b16 %v712
        %v803 = vunpack.c.l.b16 %v713
        %v804 = vunpack.c.h.b16 %v713
        %v805 = vunpack.c.l.b16 %v714
        %v806 = vunpack.c.h.b16 %v714
        %v807 = vunpack.c.l.b16 %v715
        %v808 = vunpack.c.h.b16 %v715
        %v809 = vunpack.c.l.b16 %v716
        %v810 = vunpack.c.h.b16 %v716
        %v811 = vunpack.c.l.b16 %v717
        %v812 = vunpack.c.h.b16 %v717
        %v813 = vunpack.c.l.b16 %v718
        %v814 = vunpack.c.h.b16 %v718
        %v815 = vunpack.c.l.b16 %v719
        %v816 = vunpack.c.h.b16 %v719
        %v817 = vunpack.c.l.b16 %v720
        %v818 = vunpack.c.h.b16 %v720
        %v819 = vunpack.c.l.b16 %v721
        %v820 = vunpack.c.h.b16 %v721
        %v821 = vunpack.c.l.b16 %v722
        %v822 = vunpack.c.h.b16 %v722
        %v823 = vpack.c.b16 %v761, %v759
        %v824 = vpack.c.b16 %v762, %v760
        %v825 = vpack.c.b16 %v765, %v763
        %v826 = vpack.c.b16 %v766, %v764
        %v827 = vpack.c.b16 %v769, %v767
        %v828 = vpack.c.b16 %v770, %v768
        %v829 = vpack.c.b16 %v773, %v771
        %v830 = vpack.c.b16 %v774, %v772
        %v831 = vpack.c.b16 %v777, %v775
        %v832 = vpack.c.b16 %v778, %v776
        %v833 = vpack.c.b16 %v781, %v779
        %v834 = vpack.c.b16 %v782, %v780
        %v835 = vpack.c.b16 %v785, %v783
        %v836 = vpack.c.b16 %v786, %v784
        %v837 = vpack.c.b16 %v789, %v787
        %v838 = vpack.c.b16 %v790, %v788
        %v839 = vpack.c.b16 %v793, %v791
        %v840 = vpack.c.b16 %v794, %v792
        %v841 = vpack.c.b16 %v797, %v795
        %v842 = vpack.c.b16 %v798, %v796
        %v843 = vpack.c.b16 %v801, %v799
        %v844 = vpack.c.b16 %v802, %v800
        %v845 = vpack.c.b16 %v805, %v803
        %v846 = vpack.c.b16 %v806, %v804
        %v847 = vpack.c.b16 %v809, %v807
        %v848 = vpack.c.b16 %v810, %v808
        %v849 = vpack.c.b16 %v813, %v811
        %v850 = vpack.c.b16 %v814, %v812
        %v851 = vpack.c.b16 %v817, %v815
        %v852 = vpack.c.b16 %v818, %v816
        %v853 = vpack.c.b16 %v821, %v819
        %v854 = vpack.c.b16 %v822, %v820
        %887 = vmatpush.bf16.msra.mxu0 %v837
        %888 = vmatpush.bf16.msra.mxu0 %v835
        %889 = vmatpush.bf16.msra.mxu0 %v833
        %890 = vmatpush.bf16.msra.mxu0 %v831
        %891 = vmatpush.bf16.msra.mxu0 %v829
        %892 = vmatpush.bf16.msra.mxu0 %v827
        %893 = vmatpush.bf16.msra.mxu0 %v825
        %894 = vmatpush.bf16.msra.mxu0 %v823
        %895 = vmatmul.bf16.gmra.mxu0 %v723
        %v896 = vpop.f32.mrf.mxu0
        %v897 = vadd.f32 %v725, %v896
        %v898 = vpop.f32.mrf.mxu0
        %v899 = vadd.f32 %v725, %v898
        %900 = vdwg.mxu0
        %901 = vmatpush.bf16.msra.mxu0 %v853
        %902 = vmatpush.bf16.msra.mxu0 %v851
        %903 = vmatpush.bf16.msra.mxu0 %v849
        %904 = vmatpush.bf16.msra.mxu0 %v847
        %905 = vmatpush.bf16.msra.mxu0 %v845
        %906 = vmatpush.bf16.msra.mxu0 %v843
        %907 = vmatpush.bf16.msra.mxu0 %v841
        %908 = vmatpush.bf16.msra.mxu0 %v839
        %909 = vmatmul.bf16.gmra.mxu0 %v724
        %v910 = vpop.f32.mrf.mxu0
        %v911 = vadd.f32 %v897, %v910
        %v912 = vpop.f32.mrf.mxu0
        %v913 = vadd.f32 %v899, %v912
        %914 = vdwg.mxu0
        %915 = vmatpush.bf16.msra.mxu0 %v838
        %916 = vmatpush.bf16.msra.mxu0 %v836
        %917 = vmatpush.bf16.msra.mxu0 %v834
        %918 = vmatpush.bf16.msra.mxu0 %v832
        %919 = vmatpush.bf16.msra.mxu0 %v830
        %920 = vmatpush.bf16.msra.mxu0 %v828
        %921 = vmatpush.bf16.msra.mxu0 %v826
        %922 = vmatpush.bf16.msra.mxu0 %v824
        %923 = vmatmul.bf16.gmra.mxu0 %v723
        %v924 = vpop.f32.mrf.mxu0
        %v925 = vadd.f32 %v726, %v924
        %v926 = vpop.f32.mrf.mxu0
        %v927 = vadd.f32 %v726, %v926
        %928 = vdwg.mxu0
        %929 = vmatpush.bf16.msra.mxu0 %v854
        %930 = vmatpush.bf16.msra.mxu0 %v852
        %931 = vmatpush.bf16.msra.mxu0 %v850
        %932 = vmatpush.bf16.msra.mxu0 %v848
        %933 = vmatpush.bf16.msra.mxu0 %v846
        %934 = vmatpush.bf16.msra.mxu0 %v844
        %935 = vmatpush.bf16.msra.mxu0 %v842
        %936 = vmatpush.bf16.msra.mxu0 %v840
        %937 = vmatmul.bf16.gmra.mxu0 %v724
        %v938 = vpop.f32.mrf.mxu0
        %v939 = vadd.f32 %v925, %v938
        %v940 = vpop.f32.mrf.mxu0
        %v941 = vadd.f32 %v927, %v940
        %942 = vdwg.mxu0
        %v943 = vmax.f32 %v911, 0.0
        %v944 = vmax.f32 %v939, 0.0
        %v945 = vmax.f32 %v913, 0.0
        %v946 = vmax.f32 %v941, 0.0
        %v947 = vadd.f32 %v943, %v686
        %v948 = vadd.f32 %v944, %v687
        %v949 = vadd.f32 %v945, %v688
        %v950 = vadd.f32 %v946, %v689
        %s951 = scalar_lea.vmem [#allocation7], 512
        %v952 = vld [vmem:[%s951] sm:$0xff]
        %v953 = vld [vmem:[%s951 + $0x8] sm:$0xff]
        %v954 = vld [vmem:[%s951 + $0x10] sm:$0xff]
        %v955 = vld [vmem:[%s951 + $0x18] sm:$0xff]
        %v956 = vld [vmem:[%s951 + $0x20] sm:$0xff]
        %v957 = vld [vmem:[%s951 + $0x28] sm:$0xff]
        %v958 = vld [vmem:[%s951 + $0x30] sm:$0xff]
        %v959 = vld [vmem:[%s951 + $0x38] sm:$0xff]
        %v960 = vld [vmem:[%s951 + $0x40] sm:$0xff]
        %v961 = vld [vmem:[%s951 + $0x48] sm:$0xff]
        %v962 = vld [vmem:[%s951 + $0x50] sm:$0xff]
        %v963 = vld [vmem:[%s951 + $0x58] sm:$0xff]
        %v964 = vld [vmem:[%s951 + $0x60] sm:$0xff]
        %v965 = vld [vmem:[%s951 + $0x68] sm:$0xff]
        %v966 = vld [vmem:[%s951 + $0x70] sm:$0xff]
        %v967 = vld [vmem:[%s951 + $0x78] sm:$0xff]
        %v968 = vld [vmem:[%s951 + $0x80] sm:$0xff]
        %v969 = vld [vmem:[%s951 + $0x88] sm:$0xff]
        %v970 = vld [vmem:[%s951 + $0x90] sm:$0xff]
        %v971 = vld [vmem:[%s951 + $0x98] sm:$0xff]
        %v972 = vld [vmem:[%s951 + $0xa0] sm:$0xff]
        %v973 = vld [vmem:[%s951 + $0xa8] sm:$0xff]
        %v974 = vld [vmem:[%s951 + $0xb0] sm:$0xff]
        %v975 = vld [vmem:[%s951 + $0xb8] sm:$0xff]
        %v976 = vld [vmem:[%s951 + $0xc0] sm:$0xff]
        %v977 = vld [vmem:[%s951 + $0xc8] sm:$0xff]
        %v978 = vld [vmem:[%s951 + $0xd0] sm:$0xff]
        %v979 = vld [vmem:[%s951 + $0xd8] sm:$0xff]
        %v980 = vld [vmem:[%s951 + $0xe0] sm:$0xff]
        %v981 = vld [vmem:[%s951 + $0xe8] sm:$0xff]
        %v982 = vld [vmem:[%s951 + $0xf0] sm:$0xff]
        %v983 = vld [vmem:[%s951 + $0xf8] sm:$0xff]
        %v984 = vpack.c.bf16 %v949, %v947
        %v985 = vpack.c.bf16 %v950, %v948
        %v986 = vperm.slane %v339, 3
        %v987 = vperm.slane %v340, 3
        %v1020 = vunpack.c.l.b16 %v952
        %v1021 = vunpack.c.h.b16 %v952
        %v1022 = vunpack.c.l.b16 %v953
        %v1023 = vunpack.c.h.b16 %v953
        %v1024 = vunpack.c.l.b16 %v954
        %v1025 = vunpack.c.h.b16 %v954
        %v1026 = vunpack.c.l.b16 %v955
        %v1027 = vunpack.c.h.b16 %v955
        %v1028 = vunpack.c.l.b16 %v956
        %v1029 = vunpack.c.h.b16 %v956
        %v1030 = vunpack.c.l.b16 %v957
        %v1031 = vunpack.c.h.b16 %v957
        %v1032 = vunpack.c.l.b16 %v958
        %v1033 = vunpack.c.h.b16 %v958
        %v1034 = vunpack.c.l.b16 %v959
        %v1035 = vunpack.c.h.b16 %v959
        %v1036 = vunpack.c.l.b16 %v960
        %v1037 = vunpack.c.h.b16 %v960
        %v1038 = vunpack.c.l.b16 %v961
        %v1039 = vunpack.c.h.b16 %v961
        %v1040 = vunpack.c.l.b16 %v962
        %v1041 = vunpack.c.h.b16 %v962
        %v1042 = vunpack.c.l.b16 %v963
        %v1043 = vunpack.c.h.b16 %v963
        %v1044 = vunpack.c.l.b16 %v964
        %v1045 = vunpack.c.h.b16 %v964
        %v1046 = vunpack.c.l.b16 %v965
        %v1047 = vunpack.c.h.b16 %v965
        %v1048 = vunpack.c.l.b16 %v966
        %v1049 = vunpack.c.h.b16 %v966
        %v1050 = vunpack.c.l.b16 %v967
        %v1051 = vunpack.c.h.b16 %v967
        %v1052 = vunpack.c.l.b16 %v968
        %v1053 = vunpack.c.h.b16 %v968
        %v1054 = vunpack.c.l.b16 %v969
        %v1055 = vunpack.c.h.b16 %v969
        %v1056 = vunpack.c.l.b16 %v970
        %v1057 = vunpack.c.h.b16 %v970
        %v1058 = vunpack.c.l.b16 %v971
        %v1059 = vunpack.c.h.b16 %v971
        %v1060 = vunpack.c.l.b16 %v972
        %v1061 = vunpack.c.h.b16 %v972
        %v1062 = vunpack.c.l.b16 %v973
        %v1063 = vunpack.c.h.b16 %v973
        %v1064 = vunpack.c.l.b16 %v974
        %v1065 = vunpack.c.h.b16 %v974
        %v1066 = vunpack.c.l.b16 %v975
        %v1067 = vunpack.c.h.b16 %v975
        %v1068 = vunpack.c.l.b16 %v976
        %v1069 = vunpack.c.h.b16 %v976
        %v1070 = vunpack.c.l.b16 %v977
        %v1071 = vunpack.c.h.b16 %v977
        %v1072 = vunpack.c.l.b16 %v978
        %v1073 = vunpack.c.h.b16 %v978
        %v1074 = vunpack.c.l.b16 %v979
        %v1075 = vunpack.c.h.b16 %v979
        %v1076 = vunpack.c.l.b16 %v980
        %v1077 = vunpack.c.h.b16 %v980
        %v1078 = vunpack.c.l.b16 %v981
        %v1079 = vunpack.c.h.b16 %v981
        %v1080 = vunpack.c.l.b16 %v982
        %v1081 = vunpack.c.h.b16 %v982
        %v1082 = vunpack.c.l.b16 %v983
        %v1083 = vunpack.c.h.b16 %v983
        %v1084 = vpack.c.b16 %v1022, %v1020
        %v1085 = vpack.c.b16 %v1023, %v1021
        %v1086 = vpack.c.b16 %v1026, %v1024
        %v1087 = vpack.c.b16 %v1027, %v1025
        %v1088 = vpack.c.b16 %v1030, %v1028
        %v1089 = vpack.c.b16 %v1031, %v1029
        %v1090 = vpack.c.b16 %v1034, %v1032
        %v1091 = vpack.c.b16 %v1035, %v1033
        %v1092 = vpack.c.b16 %v1038, %v1036
        %v1093 = vpack.c.b16 %v1039, %v1037
        %v1094 = vpack.c.b16 %v1042, %v1040
        %v1095 = vpack.c.b16 %v1043, %v1041
        %v1096 = vpack.c.b16 %v1046, %v1044
        %v1097 = vpack.c.b16 %v1047, %v1045
        %v1098 = vpack.c.b16 %v1050, %v1048
        %v1099 = vpack.c.b16 %v1051, %v1049
        %v1100 = vpack.c.b16 %v1054, %v1052
        %v1101 = vpack.c.b16 %v1055, %v1053
        %v1102 = vpack.c.b16 %v1058, %v1056
        %v1103 = vpack.c.b16 %v1059, %v1057
        %v1104 = vpack.c.b16 %v1062, %v1060
        %v1105 = vpack.c.b16 %v1063, %v1061
        %v1106 = vpack.c.b16 %v1066, %v1064
        %v1107 = vpack.c.b16 %v1067, %v1065
        %v1108 = vpack.c.b16 %v1070, %v1068
        %v1109 = vpack.c.b16 %v1071, %v1069
        %v1110 = vpack.c.b16 %v1074, %v1072
        %v1111 = vpack.c.b16 %v1075, %v1073
        %v1112 = vpack.c.b16 %v1078, %v1076
        %v1113 = vpack.c.b16 %v1079, %v1077
        %v1114 = vpack.c.b16 %v1082, %v1080
        %v1115 = vpack.c.b16 %v1083, %v1081
        %1148 = vmatpush.bf16.msra.mxu0 %v1098
        %1149 = vmatpush.bf16.msra.mxu0 %v1096
        %1150 = vmatpush.bf16.msra.mxu0 %v1094
        %1151 = vmatpush.bf16.msra.mxu0 %v1092
        %1152 = vmatpush.bf16.msra.mxu0 %v1090
        %1153 = vmatpush.bf16.msra.mxu0 %v1088
        %1154 = vmatpush.bf16.msra.mxu0 %v1086
        %1155 = vmatpush.bf16.msra.mxu0 %v1084
        %1156 = vmatmul.bf16.gmra.mxu0 %v984
        %v1157 = vpop.f32.mrf.mxu0
        %v1158 = vadd.f32 %v986, %v1157
        %v1159 = vpop.f32.mrf.mxu0
        %v1160 = vadd.f32 %v986, %v1159
        %1161 = vdwg.mxu0
        %1162 = vmatpush.bf16.msra.mxu0 %v1114
        %1163 = vmatpush.bf16.msra.mxu0 %v1112
        %1164 = vmatpush.bf16.msra.mxu0 %v1110
        %1165 = vmatpush.bf16.msra.mxu0 %v1108
        %1166 = vmatpush.bf16.msra.mxu0 %v1106
        %1167 = vmatpush.bf16.msra.mxu0 %v1104
        %1168 = vmatpush.bf16.msra.mxu0 %v1102
        %1169 = vmatpush.bf16.msra.mxu0 %v1100
        %1170 = vmatmul.bf16.gmra.mxu0 %v985
        %v1171 = vpop.f32.mrf.mxu0
        %v1172 = vadd.f32 %v1158, %v1171
        %v1173 = vpop.f32.mrf.mxu0
        %v1174 = vadd.f32 %v1160, %v1173
        %1175 = vdwg.mxu0
        %1176 = vmatpush.bf16.msra.mxu0 %v1099
        %1177 = vmatpush.bf16.msra.mxu0 %v1097
        %1178 = vmatpush.bf16.msra.mxu0 %v1095
        %1179 = vmatpush.bf16.msra.mxu0 %v1093
        %1180 = vmatpush.bf16.msra.mxu0 %v1091
        %1181 = vmatpush.bf16.msra.mxu0 %v1089
        %1182 = vmatpush.bf16.msra.mxu0 %v1087
        %1183 = vmatpush.bf16.msra.mxu0 %v1085
        %1184 = vmatmul.bf16.gmra.mxu0 %v984
        %v1185 = vpop.f32.mrf.mxu0
        %v1186 = vadd.f32 %v987, %v1185
        %v1187 = vpop.f32.mrf.mxu0
        %v1188 = vadd.f32 %v987, %v1187
        %1189 = vdwg.mxu0
        %1190 = vmatpush.bf16.msra.mxu0 %v1115
        %1191 = vmatpush.bf16.msra.mxu0 %v1113
        %1192 = vmatpush.bf16.msra.mxu0 %v1111
        %1193 = vmatpush.bf16.msra.mxu0 %v1109
        %1194 = vmatpush.bf16.msra.mxu0 %v1107
        %1195 = vmatpush.bf16.msra.mxu0 %v1105
        %1196 = vmatpush.bf16.msra.mxu0 %v1103
        %1197 = vmatpush.bf16.msra.mxu0 %v1101
        %1198 = vmatmul.bf16.gmra.mxu0 %v985
        %v1199 = vpop.f32.mrf.mxu0
        %v1200 = vadd.f32 %v1186, %v1199
        %v1201 = vpop.f32.mrf.mxu0
        %v1202 = vadd.f32 %v1188, %v1201
        %1203 = vdwg.mxu0
        %v1204 = vmax.f32 %v1172, 0.0
        %v1205 = vmax.f32 %v1200, 0.0
        %v1206 = vmax.f32 %v1174, 0.0
        %v1207 = vmax.f32 %v1202, 0.0
        %v1208 = vadd.f32 %v1204, %v947
        %v1209 = vadd.f32 %v1205, %v948
        %v1210 = vadd.f32 %v1206, %v949
        %v1211 = vadd.f32 %v1207, %v950
        %s1212 = scalar_lea.vmem [#allocation7], 768
        %v1213 = vld [vmem:[%s1212] sm:$0xff]
        %v1214 = vld [vmem:[%s1212 + $0x8] sm:$0xff]
        %v1215 = vld [vmem:[%s1212 + $0x10] sm:$0xff]
        %v1216 = vld [vmem:[%s1212 + $0x18] sm:$0xff]
        %v1217 = vld [vmem:[%s1212 + $0x20] sm:$0xff]
        %v1218 = vld [vmem:[%s1212 + $0x28] sm:$0xff]
        %v1219 = vld [vmem:[%s1212 + $0x30] sm:$0xff]
        %v1220 = vld [vmem:[%s1212 + $0x38] sm:$0xff]
        %v1221 = vld [vmem:[%s1212 + $0x40] sm:$0xff]
        %v1222 = vld [vmem:[%s1212 + $0x48] sm:$0xff]
        %v1223 = vld [vmem:[%s1212 + $0x50] sm:$0xff]
        %v1224 = vld [vmem:[%s1212 + $0x58] sm:$0xff]
        %v1225 = vld [vmem:[%s1212 + $0x60] sm:$0xff]
        %v1226 = vld [vmem:[%s1212 + $0x68] sm:$0xff]
        %v1227 = vld [vmem:[%s1212 + $0x70] sm:$0xff]
        %v1228 = vld [vmem:[%s1212 + $0x78] sm:$0xff]
        %v1229 = vld [vmem:[%s1212 + $0x80] sm:$0xff]
        %v1230 = vld [vmem:[%s1212 + $0x88] sm:$0xff]
        %v1231 = vld [vmem:[%s1212 + $0x90] sm:$0xff]
        %v1232 = vld [vmem:[%s1212 + $0x98] sm:$0xff]
        %v1233 = vld [vmem:[%s1212 + $0xa0] sm:$0xff]
        %v1234 = vld [vmem:[%s1212 + $0xa8] sm:$0xff]
        %v1235 = vld [vmem:[%s1212 + $0xb0] sm:$0xff]
        %v1236 = vld [vmem:[%s1212 + $0xb8] sm:$0xff]
        %v1237 = vld [vmem:[%s1212 + $0xc0] sm:$0xff]
        %v1238 = vld [vmem:[%s1212 + $0xc8] sm:$0xff]
        %v1239 = vld [vmem:[%s1212 + $0xd0] sm:$0xff]
        %v1240 = vld [vmem:[%s1212 + $0xd8] sm:$0xff]
        %v1241 = vld [vmem:[%s1212 + $0xe0] sm:$0xff]
        %v1242 = vld [vmem:[%s1212 + $0xe8] sm:$0xff]
        %v1243 = vld [vmem:[%s1212 + $0xf0] sm:$0xff]
        %v1244 = vld [vmem:[%s1212 + $0xf8] sm:$0xff]
        %v1245 = vpack.c.bf16 %v1210, %v1208
        %v1246 = vpack.c.bf16 %v1211, %v1209
        %v1247 = vperm.slane %v339, 4
        %v1248 = vperm.slane %v340, 4
        %v1281 = vunpack.c.l.b16 %v1213
        %v1282 = vunpack.c.h.b16 %v1213
        %v1283 = vunpack.c.l.b16 %v1214
        %v1284 = vunpack.c.h.b16 %v1214
        %v1285 = vunpack.c.l.b16 %v1215
        %v1286 = vunpack.c.h.b16 %v1215
        %v1287 = vunpack.c.l.b16 %v1216
        %v1288 = vunpack.c.h.b16 %v1216
        %v1289 = vunpack.c.l.b16 %v1217
        %v1290 = vunpack.c.h.b16 %v1217
        %v1291 = vunpack.c.l.b16 %v1218
        %v1292 = vunpack.c.h.b16 %v1218
        %v1293 = vunpack.c.l.b16 %v1219
        %v1294 = vunpack.c.h.b16 %v1219
        %v1295 = vunpack.c.l.b16 %v1220
        %v1296 = vunpack.c.h.b16 %v1220
        %v1297 = vunpack.c.l.b16 %v1221
        %v1298 = vunpack.c.h.b16 %v1221
        %v1299 = vunpack.c.l.b16 %v1222
        %v1300 = vunpack.c.h.b16 %v1222
        %v1301 = vunpack.c.l.b16 %v1223
        %v1302 = vunpack.c.h.b16 %v1223
        %v1303 = vunpack.c.l.b16 %v1224
        %v1304 = vunpack.c.h.b16 %v1224
        %v1305 = vunpack.c.l.b16 %v1225
        %v1306 = vunpack.c.h.b16 %v1225
        %v1307 = vunpack.c.l.b16 %v1226
        %v1308 = vunpack.c.h.b16 %v1226
        %v1309 = vunpack.c.l.b16 %v1227
        %v1310 = vunpack.c.h.b16 %v1227
        %v1311 = vunpack.c.l.b16 %v1228
        %v1312 = vunpack.c.h.b16 %v1228
        %v1313 = vunpack.c.l.b16 %v1229
        %v1314 = vunpack.c.h.b16 %v1229
        %v1315 = vunpack.c.l.b16 %v1230
        %v1316 = vunpack.c.h.b16 %v1230
        %v1317 = vunpack.c.l.b16 %v1231
        %v1318 = vunpack.c.h.b16 %v1231
        %v1319 = vunpack.c.l.b16 %v1232
        %v1320 = vunpack.c.h.b16 %v1232
        %v1321 = vunpack.c.l.b16 %v1233
        %v1322 = vunpack.c.h.b16 %v1233
        %v1323 = vunpack.c.l.b16 %v1234
        %v1324 = vunpack.c.h.b16 %v1234
        %v1325 = vunpack.c.l.b16 %v1235
        %v1326 = vunpack.c.h.b16 %v1235
        %v1327 = vunpack.c.l.b16 %v1236
        %v1328 = vunpack.c.h.b16 %v1236
        %v1329 = vunpack.c.l.b16 %v1237
        %v1330 = vunpack.c.h.b16 %v1237
        %v1331 = vunpack.c.l.b16 %v1238
        %v1332 = vunpack.c.h.b16 %v1238
        %v1333 = vunpack.c.l.b16 %v1239
        %v1334 = vunpack.c.h.b16 %v1239
        %v1335 = vunpack.c.l.b16 %v1240
        %v1336 = vunpack.c.h.b16 %v1240
        %v1337 = vunpack.c.l.b16 %v1241
        %v1338 = vunpack.c.h.b16 %v1241
        %v1339 = vunpack.c.l.b16 %v1242
        %v1340 = vunpack.c.h.b16 %v1242
        %v1341 = vunpack.c.l.b16 %v1243
        %v1342 = vunpack.c.h.b16 %v1243
        %v1343 = vunpack.c.l.b16 %v1244
        %v1344 = vunpack.c.h.b16 %v1244
        %v1345 = vpack.c.b16 %v1283, %v1281
        %v1346 = vpack.c.b16 %v1284, %v1282
        %v1347 = vpack.c.b16 %v1287, %v1285
        %v1348 = vpack.c.b16 %v1288, %v1286
        %v1349 = vpack.c.b16 %v1291, %v1289
        %v1350 = vpack.c.b16 %v1292, %v1290
        %v1351 = vpack.c.b16 %v1295, %v1293
        %v1352 = vpack.c.b16 %v1296, %v1294
        %v1353 = vpack.c.b16 %v1299, %v1297
        %v1354 = vpack.c.b16 %v1300, %v1298
        %v1355 = vpack.c.b16 %v1303, %v1301
        %v1356 = vpack.c.b16 %v1304, %v1302
        %v1357 = vpack.c.b16 %v1307, %v1305
        %v1358 = vpack.c.b16 %v1308, %v1306
        %v1359 = vpack.c.b16 %v1311, %v1309
        %v1360 = vpack.c.b16 %v1312, %v1310
        %v1361 = vpack.c.b16 %v1315, %v1313
        %v1362 = vpack.c.b16 %v1316, %v1314
        %v1363 = vpack.c.b16 %v1319, %v1317
        %v1364 = vpack.c.b16 %v1320, %v1318
        %v1365 = vpack.c.b16 %v1323, %v1321
        %v1366 = vpack.c.b16 %v1324, %v1322
        %v1367 = vpack.c.b16 %v1327, %v1325
        %v1368 = vpack.c.b16 %v1328, %v1326
        %v1369 = vpack.c.b16 %v1331, %v1329
        %v1370 = vpack.c.b16 %v1332, %v1330
        %v1371 = vpack.c.b16 %v1335, %v1333
        %v1372 = vpack.c.b16 %v1336, %v1334
        %v1373 = vpack.c.b16 %v1339, %v1337
        %v1374 = vpack.c.b16 %v1340, %v1338
        %v1375 = vpack.c.b16 %v1343, %v1341
        %v1376 = vpack.c.b16 %v1344, %v1342
        %1409 = vmatpush.bf16.msra.mxu0 %v1359
        %1410 = vmatpush.bf16.msra.mxu0 %v1357
        %1411 = vmatpush.bf16.msra.mxu0 %v1355
        %1412 = vmatpush.bf16.msra.mxu0 %v1353
        %1413 = vmatpush.bf16.msra.mxu0 %v1351
        %1414 = vmatpush.bf16.msra.mxu0 %v1349
        %1415 = vmatpush.bf16.msra.mxu0 %v1347
        %1416 = vmatpush.bf16.msra.mxu0 %v1345
        %1417 = vmatmul.bf16.gmra.mxu0 %v1245
        %v1418 = vpop.f32.mrf.mxu0
        %v1419 = vadd.f32 %v1247, %v1418
        %v1420 = vpop.f32.mrf.mxu0
        %v1421 = vadd.f32 %v1247, %v1420
        %1422 = vdwg.mxu0
        %1423 = vmatpush.bf16.msra.mxu0 %v1375
        %1424 = vmatpush.bf16.msra.mxu0 %v1373
        %1425 = vmatpush.bf16.msra.mxu0 %v1371
        %1426 = vmatpush.bf16.msra.mxu0 %v1369
        %1427 = vmatpush.bf16.msra.mxu0 %v1367
        %1428 = vmatpush.bf16.msra.mxu0 %v1365
        %1429 = vmatpush.bf16.msra.mxu0 %v1363
        %1430 = vmatpush.bf16.msra.mxu0 %v1361
        %1431 = vmatmul.bf16.gmra.mxu0 %v1246
        %v1432 = vpop.f32.mrf.mxu0
        %v1433 = vadd.f32 %v1419, %v1432
        %v1434 = vpop.f32.mrf.mxu0
        %v1435 = vadd.f32 %v1421, %v1434
        %1436 = vdwg.mxu0
        %1437 = vmatpush.bf16.msra.mxu0 %v1360
        %1438 = vmatpush.bf16.msra.mxu0 %v1358
        %1439 = vmatpush.bf16.msra.mxu0 %v1356
        %1440 = vmatpush.bf16.msra.mxu0 %v1354
        %1441 = vmatpush.bf16.msra.mxu0 %v1352
        %1442 = vmatpush.bf16.msra.mxu0 %v1350
        %1443 = vmatpush.bf16.msra.mxu0 %v1348
        %1444 = vmatpush.bf16.msra.mxu0 %v1346
        %1445 = vmatmul.bf16.gmra.mxu0 %v1245
        %v1446 = vpop.f32.mrf.mxu0
        %v1447 = vadd.f32 %v1248, %v1446
        %v1448 = vpop.f32.mrf.mxu0
        %v1449 = vadd.f32 %v1248, %v1448
        %1450 = vdwg.mxu0
        %1451 = vmatpush.bf16.msra.mxu0 %v1376
        %1452 = vmatpush.bf16.msra.mxu0 %v1374
        %1453 = vmatpush.bf16.msra.mxu0 %v1372
        %1454 = vmatpush.bf16.msra.mxu0 %v1370
        %1455 = vmatpush.bf16.msra.mxu0 %v1368
        %1456 = vmatpush.bf16.msra.mxu0 %v1366
        %1457 = vmatpush.bf16.msra.mxu0 %v1364
        %1458 = vmatpush.bf16.msra.mxu0 %v1362
        %1459 = vmatmul.bf16.gmra.mxu0 %v1246
        %v1460 = vpop.f32.mrf.mxu0
        %v1461 = vadd.f32 %v1447, %v1460
        %v1462 = vpop.f32.mrf.mxu0
        %v1463 = vadd.f32 %v1449, %v1462
        %1464 = vdwg.mxu0
        %v1465 = vmax.f32 %v1433, 0.0
        %v1466 = vmax.f32 %v1461, 0.0
        %v1467 = vmax.f32 %v1435, 0.0
        %v1468 = vmax.f32 %v1463, 0.0
        %v1469 = vadd.f32 %v1465, %v1208
        %v1470 = vadd.f32 %v1466, %v1209
        %v1471 = vadd.f32 %v1467, %v1210
        %v1472 = vadd.f32 %v1468, %v1211
        %s1473 = scalar_lea.vmem [#allocation7], 1024
        %v1474 = vld [vmem:[%s1473] sm:$0xff]
        %v1475 = vld [vmem:[%s1473 + $0x8] sm:$0xff]
        %v1476 = vld [vmem:[%s1473 + $0x10] sm:$0xff]
        %v1477 = vld [vmem:[%s1473 + $0x18] sm:$0xff]
        %v1478 = vld [vmem:[%s1473 + $0x20] sm:$0xff]
        %v1479 = vld [vmem:[%s1473 + $0x28] sm:$0xff]
        %v1480 = vld [vmem:[%s1473 + $0x30] sm:$0xff]
        %v1481 = vld [vmem:[%s1473 + $0x38] sm:$0xff]
        %v1482 = vld [vmem:[%s1473 + $0x40] sm:$0xff]
        %v1483 = vld [vmem:[%s1473 + $0x48] sm:$0xff]
        %v1484 = vld [vmem:[%s1473 + $0x50] sm:$0xff]
        %v1485 = vld [vmem:[%s1473 + $0x58] sm:$0xff]
        %v1486 = vld [vmem:[%s1473 + $0x60] sm:$0xff]
        %v1487 = vld [vmem:[%s1473 + $0x68] sm:$0xff]
        %v1488 = vld [vmem:[%s1473 + $0x70] sm:$0xff]
        %v1489 = vld [vmem:[%s1473 + $0x78] sm:$0xff]
        %v1490 = vld [vmem:[%s1473 + $0x80] sm:$0xff]
        %v1491 = vld [vmem:[%s1473 + $0x88] sm:$0xff]
        %v1492 = vld [vmem:[%s1473 + $0x90] sm:$0xff]
        %v1493 = vld [vmem:[%s1473 + $0x98] sm:$0xff]
        %v1494 = vld [vmem:[%s1473 + $0xa0] sm:$0xff]
        %v1495 = vld [vmem:[%s1473 + $0xa8] sm:$0xff]
        %v1496 = vld [vmem:[%s1473 + $0xb0] sm:$0xff]
        %v1497 = vld [vmem:[%s1473 + $0xb8] sm:$0xff]
        %v1498 = vld [vmem:[%s1473 + $0xc0] sm:$0xff]
        %v1499 = vld [vmem:[%s1473 + $0xc8] sm:$0xff]
        %v1500 = vld [vmem:[%s1473 + $0xd0] sm:$0xff]
        %v1501 = vld [vmem:[%s1473 + $0xd8] sm:$0xff]
        %v1502 = vld [vmem:[%s1473 + $0xe0] sm:$0xff]
        %v1503 = vld [vmem:[%s1473 + $0xe8] sm:$0xff]
        %v1504 = vld [vmem:[%s1473 + $0xf0] sm:$0xff]
        %v1505 = vld [vmem:[%s1473 + $0xf8] sm:$0xff]
        %v1506 = vpack.c.bf16 %v1471, %v1469
        %v1507 = vpack.c.bf16 %v1472, %v1470
        %v1508 = vperm.slane %v339, 5
        %v1509 = vperm.slane %v340, 5
        %v1542 = vunpack.c.l.b16 %v1474
        %v1543 = vunpack.c.h.b16 %v1474
        %v1544 = vunpack.c.l.b16 %v1475
        %v1545 = vunpack.c.h.b16 %v1475
        %v1546 = vunpack.c.l.b16 %v1476
        %v1547 = vunpack.c.h.b16 %v1476
        %v1548 = vunpack.c.l.b16 %v1477
        %v1549 = vunpack.c.h.b16 %v1477
        %v1550 = vunpack.c.l.b16 %v1478
        %v1551 = vunpack.c.h.b16 %v1478
        %v1552 = vunpack.c.l.b16 %v1479
        %v1553 = vunpack.c.h.b16 %v1479
        %v1554 = vunpack.c.l.b16 %v1480
        %v1555 = vunpack.c.h.b16 %v1480
        %v1556 = vunpack.c.l.b16 %v1481
        %v1557 = vunpack.c.h.b16 %v1481
        %v1558 = vunpack.c.l.b16 %v1482
        %v1559 = vunpack.c.h.b16 %v1482
        %v1560 = vunpack.c.l.b16 %v1483
        %v1561 = vunpack.c.h.b16 %v1483
        %v1562 = vunpack.c.l.b16 %v1484
        %v1563 = vunpack.c.h.b16 %v1484
        %v1564 = vunpack.c.l.b16 %v1485
        %v1565 = vunpack.c.h.b16 %v1485
        %v1566 = vunpack.c.l.b16 %v1486
        %v1567 = vunpack.c.h.b16 %v1486
        %v1568 = vunpack.c.l.b16 %v1487
        %v1569 = vunpack.c.h.b16 %v1487
        %v1570 = vunpack.c.l.b16 %v1488
        %v1571 = vunpack.c.h.b16 %v1488
        %v1572 = vunpack.c.l.b16 %v1489
        %v1573 = vunpack.c.h.b16 %v1489
        %v1574 = vunpack.c.l.b16 %v1490
        %v1575 = vunpack.c.h.b16 %v1490
        %v1576 = vunpack.c.l.b16 %v1491
        %v1577 = vunpack.c.h.b16 %v1491
        %v1578 = vunpack.c.l.b16 %v1492
        %v1579 = vunpack.c.h.b16 %v1492
        %v1580 = vunpack.c.l.b16 %v1493
        %v1581 = vunpack.c.h.b16 %v1493
        %v1582 = vunpack.c.l.b16 %v1494
        %v1583 = vunpack.c.h.b16 %v1494
        %v1584 = vunpack.c.l.b16 %v1495
        %v1585 = vunpack.c.h.b16 %v1495
        %v1586 = vunpack.c.l.b16 %v1496
        %v1587 = vunpack.c.h.b16 %v1496
        %v1588 = vunpack.c.l.b16 %v1497
        %v1589 = vunpack.c.h.b16 %v1497
        %v1590 = vunpack.c.l.b16 %v1498
        %v1591 = vunpack.c.h.b16 %v1498
        %v1592 = vunpack.c.l.b16 %v1499
        %v1593 = vunpack.c.h.b16 %v1499
        %v1594 = vunpack.c.l.b16 %v1500
        %v1595 = vunpack.c.h.b16 %v1500
        %v1596 = vunpack.c.l.b16 %v1501
        %v1597 = vunpack.c.h.b16 %v1501
        %v1598 = vunpack.c.l.b16 %v1502
        %v1599 = vunpack.c.h.b16 %v1502
        %v1600 = vunpack.c.l.b16 %v1503
        %v1601 = vunpack.c.h.b16 %v1503
        %v1602 = vunpack.c.l.b16 %v1504
        %v1603 = vunpack.c.h.b16 %v1504
        %v1604 = vunpack.c.l.b16 %v1505
        %v1605 = vunpack.c.h.b16 %v1505
        %v1606 = vpack.c.b16 %v1544, %v1542
        %v1607 = vpack.c.b16 %v1545, %v1543
        %v1608 = vpack.c.b16 %v1548, %v1546
        %v1609 = vpack.c.b16 %v1549, %v1547
        %v1610 = vpack.c.b16 %v1552, %v1550
        %v1611 = vpack.c.b16 %v1553, %v1551
        %v1612 = vpack.c.b16 %v1556, %v1554
        %v1613 = vpack.c.b16 %v1557, %v1555
        %v1614 = vpack.c.b16 %v1560, %v1558
        %v1615 = vpack.c.b16 %v1561, %v1559
        %v1616 = vpack.c.b16 %v1564, %v1562
        %v1617 = vpack.c.b16 %v1565, %v1563
        %v1618 = vpack.c.b16 %v1568, %v1566
        %v1619 = vpack.c.b16 %v1569, %v1567
        %v1620 = vpack.c.b16 %v1572, %v1570
        %v1621 = vpack.c.b16 %v1573, %v1571
        %v1622 = vpack.c.b16 %v1576, %v1574
        %v1623 = vpack.c.b16 %v1577, %v1575
        %v1624 = vpack.c.b16 %v1580, %v1578
        %v1625 = vpack.c.b16 %v1581, %v1579
        %v1626 = vpack.c.b16 %v1584, %v1582
        %v1627 = vpack.c.b16 %v1585, %v1583
        %v1628 = vpack.c.b16 %v1588, %v1586
        %v1629 = vpack.c.b16 %v1589, %v1587
        %v1630 = vpack.c.b16 %v1592, %v1590
        %v1631 = vpack.c.b16 %v1593, %v1591
        %v1632 = vpack.c.b16 %v1596, %v1594
        %v1633 = vpack.c.b16 %v1597, %v1595
        %v1634 = vpack.c.b16 %v1600, %v1598
        %v1635 = vpack.c.b16 %v1601, %v1599
        %v1636 = vpack.c.b16 %v1604, %v1602
        %v1637 = vpack.c.b16 %v1605, %v1603
        %1670 = vmatpush.bf16.msra.mxu0 %v1620
        %1671 = vmatpush.bf16.msra.mxu0 %v1618
        %1672 = vmatpush.bf16.msra.mxu0 %v1616
        %1673 = vmatpush.bf16.msra.mxu0 %v1614
        %1674 = vmatpush.bf16.msra.mxu0 %v1612
        %1675 = vmatpush.bf16.msra.mxu0 %v1610
        %1676 = vmatpush.bf16.msra.mxu0 %v1608
        %1677 = vmatpush.bf16.msra.mxu0 %v1606
        %1678 = vmatmul.bf16.gmra.mxu0 %v1506
        %v1679 = vpop.f32.mrf.mxu0
        %v1680 = vadd.f32 %v1508, %v1679
        %v1681 = vpop.f32.mrf.mxu0
        %v1682 = vadd.f32 %v1508, %v1681
        %1683 = vdwg.mxu0
        %1684 = vmatpush.bf16.msra.mxu0 %v1636
        %1685 = vmatpush.bf16.msra.mxu0 %v1634
        %1686 = vmatpush.bf16.msra.mxu0 %v1632
        %1687 = vmatpush.bf16.msra.mxu0 %v1630
        %1688 = vmatpush.bf16.msra.mxu0 %v1628
        %1689 = vmatpush.bf16.msra.mxu0 %v1626
        %1690 = vmatpush.bf16.msra.mxu0 %v1624
        %1691 = vmatpush.bf16.msra.mxu0 %v1622
        %1692 = vmatmul.bf16.gmra.mxu0 %v1507
        %v1693 = vpop.f32.mrf.mxu0
        %v1694 = vadd.f32 %v1680, %v1693
        %v1695 = vpop.f32.mrf.mxu0
        %v1696 = vadd.f32 %v1682, %v1695
        %1697 = vdwg.mxu0
        %1698 = vmatpush.bf16.msra.mxu0 %v1621
        %1699 = vmatpush.bf16.msra.mxu0 %v1619
        %1700 = vmatpush.bf16.msra.mxu0 %v1617
        %1701 = vmatpush.bf16.msra.mxu0 %v1615
        %1702 = vmatpush.bf16.msra.mxu0 %v1613
        %1703 = vmatpush.bf16.msra.mxu0 %v1611
        %1704 = vmatpush.bf16.msra.mxu0 %v1609
        %1705 = vmatpush.bf16.msra.mxu0 %v1607
        %1706 = vmatmul.bf16.gmra.mxu0 %v1506
        %v1707 = vpop.f32.mrf.mxu0
        %v1708 = vadd.f32 %v1509, %v1707
        %v1709 = vpop.f32.mrf.mxu0
        %v1710 = vadd.f32 %v1509, %v1709
        %1711 = vdwg.mxu0
        %1712 = vmatpush.bf16.msra.mxu0 %v1637
        %1713 = vmatpush.bf16.msra.mxu0 %v1635
        %1714 = vmatpush.bf16.msra.mxu0 %v1633
        %1715 = vmatpush.bf16.msra.mxu0 %v1631
        %1716 = vmatpush.bf16.msra.mxu0 %v1629
        %1717 = vmatpush.bf16.msra.mxu0 %v1627
        %1718 = vmatpush.bf16.msra.mxu0 %v1625
        %1719 = vmatpush.bf16.msra.mxu0 %v1623
        %1720 = vmatmul.bf16.gmra.mxu0 %v1507
        %v1721 = vpop.f32.mrf.mxu0
        %v1722 = vadd.f32 %v1708, %v1721
        %v1723 = vpop.f32.mrf.mxu0
        %v1724 = vadd.f32 %v1710, %v1723
        %1725 = vdwg.mxu0
        %v1726 = vmax.f32 %v1694, 0.0
        %v1727 = vmax.f32 %v1722, 0.0
        %v1728 = vmax.f32 %v1696, 0.0
        %v1729 = vmax.f32 %v1724, 0.0
        %v1730 = vadd.f32 %v1726, %v1469
        %v1731 = vadd.f32 %v1727, %v1470
        %v1732 = vadd.f32 %v1728, %v1471
        %v1733 = vadd.f32 %v1729, %v1472
        %v1734 = vld [vmem:[#allocation8] sm:$0xf]
        %v1735 = vld [vmem:[#allocation8 + $0x4] sm:$0xf]
        %v1736 = vld [vmem:[#allocation8 + $0x8] sm:$0xf]
        %v1737 = vld [vmem:[#allocation8 + $0xc] sm:$0xf]
        %v1738 = vld [vmem:[#allocation8 + $0x10] sm:$0xf]
        %v1739 = vld [vmem:[#allocation8 + $0x14] sm:$0xf]
        %v1740 = vld [vmem:[#allocation8 + $0x18] sm:$0xf]
        %v1741 = vld [vmem:[#allocation8 + $0x1c] sm:$0xf]
        %v1742 = vld [vmem:[#allocation8 + $0x20] sm:$0xf]
        %v1743 = vld [vmem:[#allocation8 + $0x24] sm:$0xf]
        %v1744 = vld [vmem:[#allocation8 + $0x28] sm:$0xf]
        %v1745 = vld [vmem:[#allocation8 + $0x2c] sm:$0xf]
        %v1746 = vld [vmem:[#allocation8 + $0x30] sm:$0xf]
        %v1747 = vld [vmem:[#allocation8 + $0x34] sm:$0xf]
        %v1748 = vld [vmem:[#allocation8 + $0x38] sm:$0xf]
        %v1749 = vld [vmem:[#allocation8 + $0x3c] sm:$0xf]
        %v1750 = vld [vmem:[#allocation8 + $0x40] sm:$0xf]
        %v1751 = vld [vmem:[#allocation8 + $0x44] sm:$0xf]
        %v1752 = vld [vmem:[#allocation8 + $0x48] sm:$0xf]
        %v1753 = vld [vmem:[#allocation8 + $0x4c] sm:$0xf]
        %v1754 = vld [vmem:[#allocation8 + $0x50] sm:$0xf]
        %v1755 = vld [vmem:[#allocation8 + $0x54] sm:$0xf]
        %v1756 = vld [vmem:[#allocation8 + $0x58] sm:$0xf]
        %v1757 = vld [vmem:[#allocation8 + $0x5c] sm:$0xf]
        %v1758 = vld [vmem:[#allocation8 + $0x60] sm:$0xf]
        %v1759 = vld [vmem:[#allocation8 + $0x64] sm:$0xf]
        %v1760 = vld [vmem:[#allocation8 + $0x68] sm:$0xf]
        %v1761 = vld [vmem:[#allocation8 + $0x6c] sm:$0xf]
        %v1762 = vld [vmem:[#allocation8 + $0x70] sm:$0xf]
        %v1763 = vld [vmem:[#allocation8 + $0x74] sm:$0xf]
        %v1764 = vld [vmem:[#allocation8 + $0x78] sm:$0xf]
        %v1765 = vld [vmem:[#allocation8 + $0x7c] sm:$0xf]
        %v1766 = vpack.c.bf16 %v1732, %v1730
        %v1767 = vpack.c.bf16 %v1733, %v1731
        %v1768 = vld [vmem:[%s5] sm:$0x1]
        %v1770 = vperm.slane %v1768, 0
        %v1804 = vunpack.c.l.b16 %v1734
        %v1805 = vunpack.c.l.b16 %v1735
        %v1806 = vunpack.c.l.b16 %v1736
        %v1807 = vunpack.c.l.b16 %v1737
        %v1808 = vunpack.c.l.b16 %v1738
        %v1809 = vunpack.c.l.b16 %v1739
        %v1810 = vunpack.c.l.b16 %v1740
        %v1811 = vunpack.c.l.b16 %v1741
        %v1812 = vunpack.c.l.b16 %v1742
        %v1813 = vunpack.c.l.b16 %v1743
        %v1814 = vunpack.c.l.b16 %v1744
        %v1815 = vunpack.c.l.b16 %v1745
        %v1816 = vunpack.c.l.b16 %v1746
        %v1817 = vunpack.c.l.b16 %v1747
        %v1818 = vunpack.c.l.b16 %v1748
        %v1819 = vunpack.c.l.b16 %v1749
        %v1820 = vunpack.c.l.b16 %v1750
        %v1821 = vunpack.c.l.b16 %v1751
        %v1822 = vunpack.c.l.b16 %v1752
        %v1823 = vunpack.c.l.b16 %v1753
        %v1824 = vunpack.c.l.b16 %v1754
        %v1825 = vunpack.c.l.b16 %v1755
        %v1826 = vunpack.c.l.b16 %v1756
        %v1827 = vunpack.c.l.b16 %v1757
        %v1828 = vunpack.c.l.b16 %v1758
        %v1829 = vunpack.c.l.b16 %v1759
        %v1830 = vunpack.c.l.b16 %v1760
        %v1831 = vunpack.c.l.b16 %v1761
        %v1832 = vunpack.c.l.b16 %v1762
        %v1833 = vunpack.c.l.b16 %v1763
        %v1834 = vunpack.c.l.b16 %v1764
        %v1835 = vunpack.c.l.b16 %v1765
        %v1836 = vpack.c.b16 %v1805, %v1804
        %v1837 = vpack.c.b16 %v1807, %v1806
        %v1838 = vpack.c.b16 %v1809, %v1808
        %v1839 = vpack.c.b16 %v1811, %v1810
        %v1840 = vpack.c.b16 %v1813, %v1812
        %v1841 = vpack.c.b16 %v1815, %v1814
        %v1842 = vpack.c.b16 %v1817, %v1816
        %v1843 = vpack.c.b16 %v1819, %v1818
        %v1844 = vpack.c.b16 %v1821, %v1820
        %v1845 = vpack.c.b16 %v1823, %v1822
        %v1846 = vpack.c.b16 %v1825, %v1824
        %v1847 = vpack.c.b16 %v1827, %v1826
        %v1848 = vpack.c.b16 %v1829, %v1828
        %v1849 = vpack.c.b16 %v1831, %v1830
        %v1850 = vpack.c.b16 %v1833, %v1832
        %v1851 = vpack.c.b16 %v1835, %v1834
        %1868 = vmatpush.bf16.msra.mxu0 %v1843
        %1869 = vmatpush.bf16.msra.mxu0 %v1842
        %1870 = vmatpush.bf16.msra.mxu0 %v1841
        %1871 = vmatpush.bf16.msra.mxu0 %v1840
        %1872 = vmatpush.bf16.msra.mxu0 %v1839
        %1873 = vmatpush.bf16.msra.mxu0 %v1838
        %1874 = vmatpush.bf16.msra.mxu0 %v1837
        %1875 = vmatpush.bf16.msra.mxu0 %v1836
        %1876 = vmatmul.bf16.gmra.mxu0 %v1766
        %v1877 = vpop.f32.mrf.mxu0
        %v1878 = vadd.f32 %v1770, %v1877
        %v1879 = vpop.f32.mrf.mxu0
        %v1880 = vadd.f32 %v1770, %v1879
        %1881 = vdwg.mxu0
        %1882 = vmatpush.bf16.msra.mxu0 %v1851
        %1883 = vmatpush.bf16.msra.mxu0 %v1850
        %1884 = vmatpush.bf16.msra.mxu0 %v1849
        %1885 = vmatpush.bf16.msra.mxu0 %v1848
        %1886 = vmatpush.bf16.msra.mxu0 %v1847
        %1887 = vmatpush.bf16.msra.mxu0 %v1846
        %1888 = vmatpush.bf16.msra.mxu0 %v1845
        %1889 = vmatpush.bf16.msra.mxu0 %v1844
        %1890 = vmatmul.bf16.gmra.mxu0 %v1767
        %v1891 = vpop.f32.mrf.mxu0
        %v1892 = vadd.f32 %v1878, %v1891
        %v1893 = vpop.f32.mrf.mxu0
        %v1894 = vadd.f32 %v1880, %v1893
        %1895 = vdwg.mxu0
        %1896 = vst [vmem:[%s335] sm:$0xff] %v1892
        %1897 = vst [vmem:[%s335 + $0x8] sm:$0xff] %v1894
        %s1898 = sand.u32 %s164, 1
        %s1899 = scalar_lea.sflag [#allocation4], %s1898
        %s1900 = sand.u32 %s164, 1
        %s1901 = smul.addr %s1900, 16
        %s1902 = scalar_lea.vmem [#allocation11], %s1901
        // Predicated region
        $region65: #{tpu_custom_call.1} parent=43 // pred_check
          %p1903 = pneg %p174
        $region66: #{tpu_custom_call.1} parent=43 // pred_check_branch
          %1905 = sbr.rel (%p1903) target = $region68
        $region67: #{tpu_custom_call.1} parent=43 // pred_region
          %s1906 = smul.u32 2, %s25
          %1908 = vsyncadd %s1899, 0
          %s1909 = smul.addr %s1906, 8
          %s1910 = scalar_lea.hbm %s6, %s1909
          %s1911 = sshll.u32 %s1902, 4
          %s1912 = int_to_ptr.vmem [resolvable:$true] %s1911
          %s1913 = sshll.u32 %s1910, 4
          %s1914 = int_to_ptr.hbm [resolvable:$true] %s1913
          %1919 = dma.vmem_to_hbm [thread:$0]  %s1912, 256, %s1914, %s1899, 128, 128, 8
        $region68: #{tpu_custom_call.1} parent=43 // pred_fallthru
          _
      $region44: #{tpu_custom_call.1} parent=5 // pred_fallthru
        _
      %p1920 = scmp.le.s32.totalorder 2, %s20
      // Predicated region
      $region69: #{tpu_custom_call.1} parent=5 // pred_check
        %p1921 = pneg %p1920
      $region70: #{tpu_custom_call.1} parent=5 // pred_check_branch
        %1923 = sbr.rel (%p1921) target = $region72
      $region71: #{tpu_custom_call.1} parent=5 // pred_region
        %s1924 = ssub.s32 %s20, 2
        // Predicated region
        $region73: #{tpu_custom_call.1} parent=71 // pred_check
          %p1925 = pneg %p180
        $region74: #{tpu_custom_call.1} parent=71 // pred_check_branch
          %1927 = sbr.rel (%p1925) target = $region76
        $region75: #{tpu_custom_call.1} parent=71 // pred_region
          %s1928 = sand.u32 %s165, 1
          %s1929 = scalar_lea.sflag [#allocation4], %s1928
          %s1930 = sand.u32 %s165, 1
          %s1931 = smul.addr %s1930, 16
          %s1932 = scalar_lea.vmem [#allocation11], %s1931
          %1934 = dma.done %s1929, 256
        $region76: #{tpu_custom_call.1} parent=71 // pred_fallthru
          _
      $region72: #{tpu_custom_call.1} parent=5 // pred_fallthru
        _
    $region6: #{tpu_custom_call.1} parent=1 // loop_footer
      %s24 = sadd.s32 1, %s20
    $region7: #{tpu_custom_call.1} parent=1 // loop_footer_branch
      %19 = sbr.rel target = $region3
    $region8: #{tpu_custom_call.1} parent=1 // loop_exit
      _
    %1935 = vsyncpa [#allocation3], 1
    %s1936 = scalar_lea.sflag [#allocation3], 1
    %1937 = vsyncpa %s1936, 1
    %1938 = vsyncpa [#allocation6], 1
    %1939 = vsyncpa [#allocation9], 1
    %1940 = vsyncpa [#allocation4], 1
    %s1941 = scalar_lea.sflag [#allocation4], 1
    %1942 = vsyncpa %s1941, 1

</llo_original>
